<compile_context>
chip_gen: v5e
topology: v5e:2x2
jax: 0.10.0
libtpu: 0.0.40
codegen_flags: <defaults>
</compile_context>

<pallas_src>
import functools

import jax
import jax.numpy as jnp
from jax import lax
from jax.experimental import pallas as pl
from jax.experimental.pallas import tpu as pltpu


def lstm_tagger_kernel(ids_ref, emb_proj_ref, whh_ref, b_ref,
                       wtag_ref, btag_ref, out_ref,
                       *, seq_len, hidden_dim, vocab_size):
    """ids:(L,1) i32   emb_proj:(V,4H)   whh:(4,H,H)   b:(1,4H)
    wtag:(H,T)   btag:(1,T)   out:(L,T).  Gate order is PyTorch's [i,f,g,o]."""
    L, H, V = seq_len, hidden_dim, vocab_size

    # ---- Embedding + input projection as ONE one-hot MXU matmul ----
    ids = ids_ref[...]                                             # (L, 1)
    one_hot = (lax.broadcasted_iota(jnp.int32, (L, V), 1)
               == ids).astype(jnp.float32)                         # (L, V)
    xg = (jnp.dot(one_hot, emb_proj_ref[...],
                  preferred_element_type=jnp.float32)
          + b_ref[...])                                            # (L, 4H)

    # ---- Pre-slice per-gate columns ONCE (rotations paid outside the loop) ----
    xg_i = xg[:, 0 * H:1 * H]
    xg_f = xg[:, 1 * H:2 * H]
    xg_g = xg[:, 2 * H:3 * H]
    xg_o = xg[:, 3 * H:4 * H]

    # ---- Loop-invariant, lane-aligned recurrent weights ----
    whh_i = whh_ref[0]                                             # (H, H)
    whh_f = whh_ref[1]
    whh_g = whh_ref[2]
    whh_o = whh_ref[3]

    h = jnp.zeros((1, H), jnp.float32)
    c = jnp.zeros((1, H), jnp.float32)
    hs = []

    # ---- Fully unrolled recurrence (L static); everything stays in vregs ----
    for t in range(L):
        i_g = jax.nn.sigmoid(xg_i[t:t + 1, :]
                             + jnp.dot(h, whh_i,
                                       preferred_element_type=jnp.float32))
        f_g = jax.nn.sigmoid(xg_f[t:t + 1, :]
                             + jnp.dot(h, whh_f,
                                       preferred_element_type=jnp.float32))
        g_g = jnp.tanh(xg_g[t:t + 1, :]
                       + jnp.dot(h, whh_g,
                                 preferred_element_type=jnp.float32))
        o_g = jax.nn.sigmoid(xg_o[t:t + 1, :]
                             + jnp.dot(h, whh_o,
                                       preferred_element_type=jnp.float32))
        c = f_g * c + i_g * g_g
        h = o_g * jnp.tanh(c)
        hs.append(h)

    hs_all = jnp.concatenate(hs, axis=0)                           # (L, H)

    # ---- hidden2tag projection ----
    tag_space = (jnp.dot(hs_all, wtag_ref[...],
                         preferred_element_type=jnp.float32)
                 + btag_ref[...])                                  # (L, T)

    # ---- log_softmax along the tag dimension ----
    m = jnp.max(tag_space, axis=-1, keepdims=True)
    lse = m + jnp.log(jnp.sum(jnp.exp(tag_space - m), axis=-1, keepdims=True))
    out_ref[...] = tag_space - lse


def pack_params(params):
    """One-time packing (NOT per forward call):
       * emb_proj = embedding @ W_ih^T  (V, 4H)   [gate order i,f,g,o]
       * W_hh^T split into 4 lane-aligned (H,H) blocks stacked -> (4,H,H)
       * merged LSTM bias (1,4H), W_tag^T (H,T), b_tag (1,T)."""
    H = params["w_hh"].shape[1]
    T = params["w_tag"].shape[0]
    emb = params["embedding"].astype(jnp.float32)                  # (V, E)
    w_ih = params["w_ih"].astype(jnp.float32)                      # (4H, E)
    w_hh = params["w_hh"].astype(jnp.float32)                      # (4H, H)
    b = (params["b_ih"] + params["b_hh"]).astype(jnp.float32)      # (4H,)

    emb_proj = emb @ w_ih.T                                        # (V, 4H)
    whh_t = jnp.transpose(w_hh.reshape(4, H, H), (0, 2, 1))        # (4, H, H)

    return {
        "emb_proj": emb_proj,
        "whh_t": whh_t,
        "b": b.reshape(1, 4 * H),
        "wtag_t": params["w_tag"].T.astype(jnp.float32),           # (H, T)
        "btag": params["b_tag"].reshape(1, T).astype(jnp.float32), # (1, T)
    }


@jax.jit
def lstm_tagger_forward(sentence, packed):
    """sentence: (L,) int32 token ids. Returns (L, tagset_size) log-probs."""
    V = packed["emb_proj"].shape[0]
    H = packed["whh_t"].shape[1]
    T = packed["wtag_t"].shape[1]
    L = sentence.shape[0]

    kernel = functools.partial(lstm_tagger_kernel, seq_len=L,
                               hidden_dim=H, vocab_size=V)
    ids2d = sentence.astype(jnp.int32).reshape(L, 1)

    return pl.pallas_call(
        kernel,
        out_shape=jax.ShapeDtypeStruct((L, T), jnp.float32),
        grid=(1,),
        in_specs=[
            pl.BlockSpec((L, 1), lambda i: (0, 0)),          # token ids
            pl.BlockSpec((V, 4 * H), lambda i: (0, 0)),      # emb @ W_ih^T
            pl.BlockSpec((4, H, H), lambda i: (0, 0, 0)),    # W_hh^T per gate
            pl.BlockSpec((1, 4 * H), lambda i: (0, 0)),      # merged bias
            pl.BlockSpec((H, T), lambda i: (0, 0)),          # W_tag^T
            pl.BlockSpec((1, T), lambda i: (0, 0)),          # b_tag
        ],
        out_specs=pl.BlockSpec((L, T), lambda i: (0, 0)),
        compiler_params=pltpu.CompilerParams(
            dimension_semantics=("arbitrary",)),
    )(ids2d, packed["emb_proj"], packed["whh_t"], packed["b"],
      packed["wtag_t"], packed["btag"])


def lstm_tagger_reference(sentence, params):
    """Pure-JAX reference mirroring PyTorch semantics (for verification)."""
    emb = params["embedding"][sentence]
    H = params["w_hh"].shape[1]
    w_ih, w_hh = params["w_ih"], params["w_hh"]
    b = params["b_ih"] + params["b_hh"]

    def step(carry, x):
        h, c = carry
        gates = x @ w_ih.T + h @ w_hh.T + b
        i = jax.nn.sigmoid(gates[0 * H:1 * H])
        f = jax.nn.sigmoid(gates[1 * H:2 * H])
        g = jnp.tanh(gates[2 * H:3 * H])
        o = jax.nn.sigmoid(gates[3 * H:4 * H])
        c = f * c + i * g
        h = o * jnp.tanh(c)
        return (h, c), h

    (_, _), hs = lax.scan(step, (jnp.zeros(H), jnp.zeros(H)), emb)
    tag_space = hs @ params["w_tag"].T + params["b_tag"]
    return jax.nn.log_softmax(tag_space, axis=1)


def init_params(key, embedding_dim, hidden_dim, vocab_size, tagset_size):
    ks = jax.random.split(key, 7)
    s_lstm = 1.0 / jnp.sqrt(hidden_dim)
    s_lin = 1.0 / jnp.sqrt(hidden_dim)
    u = lambda k, shape, s: jax.random.uniform(k, shape, jnp.float32, -s, s)
    return {
        "embedding": jax.random.normal(ks[0], (vocab_size, embedding_dim),
                                       jnp.float32),
        "w_ih": u(ks[1], (4 * hidden_dim, embedding_dim), s_lstm),
        "w_hh": u(ks[2], (4 * hidden_dim, hidden_dim), s_lstm),
        "b_ih": u(ks[3], (4 * hidden_dim,), s_lstm),
        "b_hh": u(ks[4], (4 * hidden_dim,), s_lstm),
        "w_tag": u(ks[5], (tagset_size, hidden_dim), s_lin),
        "b_tag": u(ks[6], (tagset_size,), s_lin),
    }


if __name__ == "__main__":
    EMBEDDING_DIM = 32
    HIDDEN_DIM = 32
    VOCAB_SIZE = 16
    TAGSET_SIZE = 8
    SEQ_LEN = 8

    key = jax.random.PRNGKey(0)
    pkey, skey = jax.random.split(key)
    params = init_params(pkey, EMBEDDING_DIM, HIDDEN_DIM, VOCAB_SIZE,
                         TAGSET_SIZE)
    sentence = jax.random.randint(skey, (SEQ_LEN,), 0, VOCAB_SIZE,
                                  dtype=jnp.int32)

    packed = pack_params(params)                      # one-time packing
    tag_scores = lstm_tagger_forward(sentence, packed)
    tag_scores = jax.block_until_ready(tag_scores)

    ref = jax.block_until_ready(lstm_tagger_reference(sentence, params))
    assert tag_scores.shape == (SEQ_LEN, TAGSET_SIZE)
    assert jnp.allclose(tag_scores, ref, atol=1e-4, rtol=1e-4), (
        "Pallas kernel output mismatch vs reference")

    print("KERNEL_OK")
</pallas_src>

<mosaic_0001>
module attributes {stable_mosaic.version = 11 : i64} {
  func.func @lstm_tagger_kernel(%arg0: i32, %arg1: memref<8x1xi32, #tpu.memory_space<vmem>>, %arg2: memref<16x128xf32, #tpu.memory_space<vmem>>, %arg3: memref<4x32x32xf32, #tpu.memory_space<vmem>>, %arg4: memref<1x128xf32, #tpu.memory_space<vmem>>, %arg5: memref<32x8xf32, #tpu.memory_space<vmem>>, %arg6: memref<1x8xf32, #tpu.memory_space<vmem>>, %arg7: memref<8x8xf32, #tpu.memory_space<vmem>>) attributes {dimension_semantics = [#tpu.dimension_semantics<arbitrary>], iteration_bounds = array<i64: 1>, scalar_prefetch = 0 : i64, scratch_operands = 0 : i64, tpu.core_type = #tpu.core_type<tc>, window_params = [{pipeline_mode = #tpu.pipeline_mode<synchronous>, transform_indices = @transform_0, window_bounds = array<i64: 8, 1>}, {pipeline_mode = #tpu.pipeline_mode<synchronous>, transform_indices = @transform_1, window_bounds = array<i64: 16, 128>}, {pipeline_mode = #tpu.pipeline_mode<synchronous>, transform_indices = @transform_2, window_bounds = array<i64: 4, 32, 32>}, {pipeline_mode = #tpu.pipeline_mode<synchronous>, transform_indices = @transform_3, window_bounds = array<i64: 1, 128>}, {pipeline_mode = #tpu.pipeline_mode<synchronous>, transform_indices = @transform_4, window_bounds = array<i64: 32, 8>}, {pipeline_mode = #tpu.pipeline_mode<synchronous>, transform_indices = @transform_5, window_bounds = array<i64: 1, 8>}, {pipeline_mode = #tpu.pipeline_mode<synchronous>, transform_indices = @transform_6, window_bounds = array<i64: 8, 8>}]} {
    %c0 = arith.constant 0 : index
    %c0_0 = arith.constant 0 : index
    %0 = vector.load %arg1[%c0, %c0_0] : memref<8x1xi32, #tpu.memory_space<vmem>>, vector<8x1xi32>
    %1 = tpu.iota {dimensions = array<i32: 1>} : vector<8x16xi32>
    %2 = vector.broadcast %0 : vector<8x1xi32> to vector<8x16xi32>
    %3 = arith.cmpi eq, %1, %2 : vector<8x16xi32>
    %4 = arith.extui %3 : vector<8x16xi1> to vector<8x16xi32>
    %5 = arith.sitofp %4 : vector<8x16xi32> to vector<8x16xf32>
    %c0_1 = arith.constant 0 : index
    %c0_2 = arith.constant 0 : index
    %6 = vector.load %arg2[%c0_1, %c0_2] : memref<16x128xf32, #tpu.memory_space<vmem>>, vector<16x128xf32>
    %cst = arith.constant dense<0.000000e+00> : vector<8x128xf32>
    %7 = tpu.matmul %5, %6, %cst {dimension_numbers = #tpu.dot_dimension_numbers<[1], [0], [0], [1], [0, 0, 1, 1], [], []>} : vector<8x16xf32>, vector<16x128xf32>, vector<8x128xf32> -> vector<8x128xf32>
    %c0_3 = arith.constant 0 : index
    %c0_4 = arith.constant 0 : index
    %8 = vector.load %arg4[%c0_3, %c0_4] : memref<1x128xf32, #tpu.memory_space<vmem>>, vector<1x128xf32>
    %9 = vector.broadcast %8 : vector<1x128xf32> to vector<8x128xf32>
    %10 = arith.addf %7, %9 : vector<8x128xf32>
    %11 = vector.extract_strided_slice %10 {offsets = [0, 0], sizes = [8, 32], strides = [1, 1]} : vector<8x128xf32> to vector<8x32xf32>
    %12 = vector.extract_strided_slice %10 {offsets = [0, 32], sizes = [8, 32], strides = [1, 1]} : vector<8x128xf32> to vector<8x32xf32>
    %13 = vector.extract_strided_slice %10 {offsets = [0, 64], sizes = [8, 32], strides = [1, 1]} : vector<8x128xf32> to vector<8x32xf32>
    %14 = vector.extract_strided_slice %10 {offsets = [0, 96], sizes = [8, 32], strides = [1, 1]} : vector<8x128xf32> to vector<8x32xf32>
    %c0_5 = arith.constant 0 : index
    %c0_6 = arith.constant 0 : index
    %c0_7 = arith.constant 0 : index
    %15 = vector.load %arg3[%c0_5, %c0_6, %c0_7] : memref<4x32x32xf32, #tpu.memory_space<vmem>>, vector<1x32x32xf32>
    %16 = vector.shape_cast %15 : vector<1x32x32xf32> to vector<32x32xf32>
    %c1 = arith.constant 1 : index
    %c0_8 = arith.constant 0 : index
    %c0_9 = arith.constant 0 : index
    %17 = vector.load %arg3[%c1, %c0_8, %c0_9] : memref<4x32x32xf32, #tpu.memory_space<vmem>>, vector<1x32x32xf32>
    %18 = vector.shape_cast %17 : vector<1x32x32xf32> to vector<32x32xf32>
    %c2 = arith.constant 2 : index
    %c0_10 = arith.constant 0 : index
    %c0_11 = arith.constant 0 : index
    %19 = vector.load %arg3[%c2, %c0_10, %c0_11] : memref<4x32x32xf32, #tpu.memory_space<vmem>>, vector<1x32x32xf32>
    %20 = vector.shape_cast %19 : vector<1x32x32xf32> to vector<32x32xf32>
    %c3 = arith.constant 3 : index
    %c0_12 = arith.constant 0 : index
    %c0_13 = arith.constant 0 : index
    %21 = vector.load %arg3[%c3, %c0_12, %c0_13] : memref<4x32x32xf32, #tpu.memory_space<vmem>>, vector<1x32x32xf32>
    %22 = vector.shape_cast %21 : vector<1x32x32xf32> to vector<32x32xf32>
    %cst_14 = arith.constant 0.000000e+00 : f32
    %23 = vector.broadcast %cst_14 : f32 to vector<1x32xf32>
    %cst_15 = arith.constant 0.000000e+00 : f32
    %24 = vector.broadcast %cst_15 : f32 to vector<1x32xf32>
    %25 = vector.extract_strided_slice %11 {offsets = [0, 0], sizes = [1, 32], strides = [1, 1]} : vector<8x32xf32> to vector<1x32xf32>
    %cst_16 = arith.constant dense<0.000000e+00> : vector<1x32xf32>
    %26 = tpu.matmul %23, %16, %cst_16 {dimension_numbers = #tpu.dot_dimension_numbers<[1], [0], [0], [1], [0, 0, 1, 1], [], []>} : vector<1x32xf32>, vector<32x32xf32>, vector<1x32xf32> -> vector<1x32xf32>
    %27 = arith.addf %25, %26 : vector<1x32xf32>
    %28 = arith.negf %27 : vector<1x32xf32>
    %29 = math.exp %28 : vector<1x32xf32>
    %cst_17 = arith.constant 1.000000e+00 : f32
    %30 = vector.broadcast %cst_17 : f32 to vector<1x32xf32>
    %31 = arith.addf %30, %29 : vector<1x32xf32>
    %32 = arith.divf %30, %31 : vector<1x32xf32>
    %33 = vector.extract_strided_slice %12 {offsets = [0, 0], sizes = [1, 32], strides = [1, 1]} : vector<8x32xf32> to vector<1x32xf32>
    %cst_18 = arith.constant dense<0.000000e+00> : vector<1x32xf32>
    %34 = tpu.matmul %23, %18, %cst_18 {dimension_numbers = #tpu.dot_dimension_numbers<[1], [0], [0], [1], [0, 0, 1, 1], [], []>} : vector<1x32xf32>, vector<32x32xf32>, vector<1x32xf32> -> vector<1x32xf32>
    %35 = arith.addf %33, %34 : vector<1x32xf32>
    %36 = arith.negf %35 : vector<1x32xf32>
    %37 = math.exp %36 : vector<1x32xf32>
    %cst_19 = arith.constant 1.000000e+00 : f32
    %38 = vector.broadcast %cst_19 : f32 to vector<1x32xf32>
    %39 = arith.addf %38, %37 : vector<1x32xf32>
    %40 = arith.divf %38, %39 : vector<1x32xf32>
    %41 = vector.extract_strided_slice %13 {offsets = [0, 0], sizes = [1, 32], strides = [1, 1]} : vector<8x32xf32> to vector<1x32xf32>
    %cst_20 = arith.constant dense<0.000000e+00> : vector<1x32xf32>
    %42 = tpu.matmul %23, %20, %cst_20 {dimension_numbers = #tpu.dot_dimension_numbers<[1], [0], [0], [1], [0, 0, 1, 1], [], []>} : vector<1x32xf32>, vector<32x32xf32>, vector<1x32xf32> -> vector<1x32xf32>
    %43 = arith.addf %41, %42 : vector<1x32xf32>
    %44 = math.tanh %43 : vector<1x32xf32>
    %45 = vector.extract_strided_slice %14 {offsets = [0, 0], sizes = [1, 32], strides = [1, 1]} : vector<8x32xf32> to vector<1x32xf32>
    %cst_21 = arith.constant dense<0.000000e+00> : vector<1x32xf32>
    %46 = tpu.matmul %23, %22, %cst_21 {dimension_numbers = #tpu.dot_dimension_numbers<[1], [0], [0], [1], [0, 0, 1, 1], [], []>} : vector<1x32xf32>, vector<32x32xf32>, vector<1x32xf32> -> vector<1x32xf32>
    %47 = arith.addf %45, %46 : vector<1x32xf32>
    %48 = arith.negf %47 : vector<1x32xf32>
    %49 = math.exp %48 : vector<1x32xf32>
    %cst_22 = arith.constant 1.000000e+00 : f32
    %50 = vector.broadcast %cst_22 : f32 to vector<1x32xf32>
    %51 = arith.addf %50, %49 : vector<1x32xf32>
    %52 = arith.divf %50, %51 : vector<1x32xf32>
    %53 = arith.mulf %40, %24 : vector<1x32xf32>
    %54 = arith.mulf %32, %44 : vector<1x32xf32>
    %55 = arith.addf %53, %54 : vector<1x32xf32>
    %56 = math.tanh %55 : vector<1x32xf32>
    %57 = arith.mulf %52, %56 : vector<1x32xf32>
    %58 = vector.extract_strided_slice %11 {offsets = [1, 0], sizes = [1, 32], strides = [1, 1]} : vector<8x32xf32> to vector<1x32xf32>
    %cst_23 = arith.constant dense<0.000000e+00> : vector<1x32xf32>
    %59 = tpu.matmul %57, %16, %cst_23 {dimension_numbers = #tpu.dot_dimension_numbers<[1], [0], [0], [1], [0, 0, 1, 1], [], []>} : vector<1x32xf32>, vector<32x32xf32>, vector<1x32xf32> -> vector<1x32xf32>
    %60 = arith.addf %58, %59 : vector<1x32xf32>
    %61 = arith.negf %60 : vector<1x32xf32>
    %62 = math.exp %61 : vector<1x32xf32>
    %cst_24 = arith.constant 1.000000e+00 : f32
    %63 = vector.broadcast %cst_24 : f32 to vector<1x32xf32>
    %64 = arith.addf %63, %62 : vector<1x32xf32>
    %65 = arith.divf %63, %64 : vector<1x32xf32>
    %66 = vector.extract_strided_slice %12 {offsets = [1, 0], sizes = [1, 32], strides = [1, 1]} : vector<8x32xf32> to vector<1x32xf32>
    %cst_25 = arith.constant dense<0.000000e+00> : vector<1x32xf32>
    %67 = tpu.matmul %57, %18, %cst_25 {dimension_numbers = #tpu.dot_dimension_numbers<[1], [0], [0], [1], [0, 0, 1, 1], [], []>} : vector<1x32xf32>, vector<32x32xf32>, vector<1x32xf32> -> vector<1x32xf32>
    %68 = arith.addf %66, %67 : vector<1x32xf32>
    %69 = arith.negf %68 : vector<1x32xf32>
    %70 = math.exp %69 : vector<1x32xf32>
    %cst_26 = arith.constant 1.000000e+00 : f32
    %71 = vector.broadcast %cst_26 : f32 to vector<1x32xf32>
    %72 = arith.addf %71, %70 : vector<1x32xf32>
    %73 = arith.divf %71, %72 : vector<1x32xf32>
    %74 = vector.extract_strided_slice %13 {offsets = [1, 0], sizes = [1, 32], strides = [1, 1]} : vector<8x32xf32> to vector<1x32xf32>
    %cst_27 = arith.constant dense<0.000000e+00> : vector<1x32xf32>
    %75 = tpu.matmul %57, %20, %cst_27 {dimension_numbers = #tpu.dot_dimension_numbers<[1], [0], [0], [1], [0, 0, 1, 1], [], []>} : vector<1x32xf32>, vector<32x32xf32>, vector<1x32xf32> -> vector<1x32xf32>
    %76 = arith.addf %74, %75 : vector<1x32xf32>
    %77 = math.tanh %76 : vector<1x32xf32>
    %78 = vector.extract_strided_slice %14 {offsets = [1, 0], sizes = [1, 32], strides = [1, 1]} : vector<8x32xf32> to vector<1x32xf32>
    %cst_28 = arith.constant dense<0.000000e+00> : vector<1x32xf32>
    %79 = tpu.matmul %57, %22, %cst_28 {dimension_numbers = #tpu.dot_dimension_numbers<[1], [0], [0], [1], [0, 0, 1, 1], [], []>} : vector<1x32xf32>, vector<32x32xf32>, vector<1x32xf32> -> vector<1x32xf32>
    %80 = arith.addf %78, %79 : vector<1x32xf32>
    %81 = arith.negf %80 : vector<1x32xf32>
    %82 = math.exp %81 : vector<1x32xf32>
    %cst_29 = arith.constant 1.000000e+00 : f32
    %83 = vector.broadcast %cst_29 : f32 to vector<1x32xf32>
    %84 = arith.addf %83, %82 : vector<1x32xf32>
    %85 = arith.divf %83, %84 : vector<1x32xf32>
    %86 = arith.mulf %73, %55 : vector<1x32xf32>
    %87 = arith.mulf %65, %77 : vector<1x32xf32>
    %88 = arith.addf %86, %87 : vector<1x32xf32>
    %89 = math.tanh %88 : vector<1x32xf32>
    %90 = arith.mulf %85, %89 : vector<1x32xf32>
    %91 = vector.extract_strided_slice %11 {offsets = [2, 0], sizes = [1, 32], strides = [1, 1]} : vector<8x32xf32> to vector<1x32xf32>
    %cst_30 = arith.constant dense<0.000000e+00> : vector<1x32xf32>
    %92 = tpu.matmul %90, %16, %cst_30 {dimension_numbers = #tpu.dot_dimension_numbers<[1], [0], [0], [1], [0, 0, 1, 1], [], []>} : vector<1x32xf32>, vector<32x32xf32>, vector<1x32xf32> -> vector<1x32xf32>
    %93 = arith.addf %91, %92 : vector<1x32xf32>
    %94 = arith.negf %93 : vector<1x32xf32>
    %95 = math.exp %94 : vector<1x32xf32>
    %cst_31 = arith.constant 1.000000e+00 : f32
    %96 = vector.broadcast %cst_31 : f32 to vector<1x32xf32>
    %97 = arith.addf %96, %95 : vector<1x32xf32>
    %98 = arith.divf %96, %97 : vector<1x32xf32>
    %99 = vector.extract_strided_slice %12 {offsets = [2, 0], sizes = [1, 32], strides = [1, 1]} : vector<8x32xf32> to vector<1x32xf32>
    %cst_32 = arith.constant dense<0.000000e+00> : vector<1x32xf32>
    %100 = tpu.matmul %90, %18, %cst_32 {dimension_numbers = #tpu.dot_dimension_numbers<[1], [0], [0], [1], [0, 0, 1, 1], [], []>} : vector<1x32xf32>, vector<32x32xf32>, vector<1x32xf32> -> vector<1x32xf32>
    %101 = arith.addf %99, %100 : vector<1x32xf32>
    %102 = arith.negf %101 : vector<1x32xf32>
    %103 = math.exp %102 : vector<1x32xf32>
    %cst_33 = arith.constant 1.000000e+00 : f32
    %104 = vector.broadcast %cst_33 : f32 to vector<1x32xf32>
    %105 = arith.addf %104, %103 : vector<1x32xf32>
    %106 = arith.divf %104, %105 : vector<1x32xf32>
    %107 = vector.extract_strided_slice %13 {offsets = [2, 0], sizes = [1, 32], strides = [1, 1]} : vector<8x32xf32> to vector<1x32xf32>
    %cst_34 = arith.constant dense<0.000000e+00> : vector<1x32xf32>
    %108 = tpu.matmul %90, %20, %cst_34 {dimension_numbers = #tpu.dot_dimension_numbers<[1], [0], [0], [1], [0, 0, 1, 1], [], []>} : vector<1x32xf32>, vector<32x32xf32>, vector<1x32xf32> -> vector<1x32xf32>
    %109 = arith.addf %107, %108 : vector<1x32xf32>
    %110 = math.tanh %109 : vector<1x32xf32>
    %111 = vector.extract_strided_slice %14 {offsets = [2, 0], sizes = [1, 32], strides = [1, 1]} : vector<8x32xf32> to vector<1x32xf32>
    %cst_35 = arith.constant dense<0.000000e+00> : vector<1x32xf32>
    %112 = tpu.matmul %90, %22, %cst_35 {dimension_numbers = #tpu.dot_dimension_numbers<[1], [0], [0], [1], [0, 0, 1, 1], [], []>} : vector<1x32xf32>, vector<32x32xf32>, vector<1x32xf32> -> vector<1x32xf32>
    %113 = arith.addf %111, %112 : vector<1x32xf32>
    %114 = arith.negf %113 : vector<1x32xf32>
    %115 = math.exp %114 : vector<1x32xf32>
    %cst_36 = arith.constant 1.000000e+00 : f32
    %116 = vector.broadcast %cst_36 : f32 to vector<1x32xf32>
    %117 = arith.addf %116, %115 : vector<1x32xf32>
    %118 = arith.divf %116, %117 : vector<1x32xf32>
    %119 = arith.mulf %106, %88 : vector<1x32xf32>
    %120 = arith.mulf %98, %110 : vector<1x32xf32>
    %121 = arith.addf %119, %120 : vector<1x32xf32>
    %122 = math.tanh %121 : vector<1x32xf32>
    %123 = arith.mulf %118, %122 : vector<1x32xf32>
    %124 = vector.extract_strided_slice %11 {offsets = [3, 0], sizes = [1, 32], strides = [1, 1]} : vector<8x32xf32> to vector<1x32xf32>
    %cst_37 = arith.constant dense<0.000000e+00> : vector<1x32xf32>
    %125 = tpu.matmul %123, %16, %cst_37 {dimension_numbers = #tpu.dot_dimension_numbers<[1], [0], [0], [1], [0, 0, 1, 1], [], []>} : vector<1x32xf32>, vector<32x32xf32>, vector<1x32xf32> -> vector<1x32xf32>
    %126 = arith.addf %124, %125 : vector<1x32xf32>
    %127 = arith.negf %126 : vector<1x32xf32>
    %128 = math.exp %127 : vector<1x32xf32>
    %cst_38 = arith.constant 1.000000e+00 : f32
    %129 = vector.broadcast %cst_38 : f32 to vector<1x32xf32>
    %130 = arith.addf %129, %128 : vector<1x32xf32>
    %131 = arith.divf %129, %130 : vector<1x32xf32>
    %132 = vector.extract_strided_slice %12 {offsets = [3, 0], sizes = [1, 32], strides = [1, 1]} : vector<8x32xf32> to vector<1x32xf32>
    %cst_39 = arith.constant dense<0.000000e+00> : vector<1x32xf32>
    %133 = tpu.matmul %123, %18, %cst_39 {dimension_numbers = #tpu.dot_dimension_numbers<[1], [0], [0], [1], [0, 0, 1, 1], [], []>} : vector<1x32xf32>, vector<32x32xf32>, vector<1x32xf32> -> vector<1x32xf32>
    %134 = arith.addf %132, %133 : vector<1x32xf32>
    %135 = arith.negf %134 : vector<1x32xf32>
    %136 = math.exp %135 : vector<1x32xf32>
    %cst_40 = arith.constant 1.000000e+00 : f32
    %137 = vector.broadcast %cst_40 : f32 to vector<1x32xf32>
    %138 = arith.addf %137, %136 : vector<1x32xf32>
    %139 = arith.divf %137, %138 : vector<1x32xf32>
    %140 = vector.extract_strided_slice %13 {offsets = [3, 0], sizes = [1, 32], strides = [1, 1]} : vector<8x32xf32> to vector<1x32xf32>
    %cst_41 = arith.constant dense<0.000000e+00> : vector<1x32xf32>
    %141 = tpu.matmul %123, %20, %cst_41 {dimension_numbers = #tpu.dot_dimension_numbers<[1], [0], [0], [1], [0, 0, 1, 1], [], []>} : vector<1x32xf32>, vector<32x32xf32>, vector<1x32xf32> -> vector<1x32xf32>
    %142 = arith.addf %140, %141 : vector<1x32xf32>
    %143 = math.tanh %142 : vector<1x32xf32>
    %144 = vector.extract_strided_slice %14 {offsets = [3, 0], sizes = [1, 32], strides = [1, 1]} : vector<8x32xf32> to vector<1x32xf32>
    %cst_42 = arith.constant dense<0.000000e+00> : vector<1x32xf32>
    %145 = tpu.matmul %123, %22, %cst_42 {dimension_numbers = #tpu.dot_dimension_numbers<[1], [0], [0], [1], [0, 0, 1, 1], [], []>} : vector<1x32xf32>, vector<32x32xf32>, vector<1x32xf32> -> vector<1x32xf32>
    %146 = arith.addf %144, %145 : vector<1x32xf32>
    %147 = arith.negf %146 : vector<1x32xf32>
    %148 = math.exp %147 : vector<1x32xf32>
    %cst_43 = arith.constant 1.000000e+00 : f32
    %149 = vector.broadcast %cst_43 : f32 to vector<1x32xf32>
    %150 = arith.addf %149, %148 : vector<1x32xf32>
    %151 = arith.divf %149, %150 : vector<1x32xf32>
    %152 = arith.mulf %139, %121 : vector<1x32xf32>
    %153 = arith.mulf %131, %143 : vector<1x32xf32>
    %154 = arith.addf %152, %153 : vector<1x32xf32>
    %155 = math.tanh %154 : vector<1x32xf32>
    %156 = arith.mulf %151, %155 : vector<1x32xf32>
    %157 = vector.extract_strided_slice %11 {offsets = [4, 0], sizes = [1, 32], strides = [1, 1]} : vector<8x32xf32> to vector<1x32xf32>
    %cst_44 = arith.constant dense<0.000000e+00> : vector<1x32xf32>
    %158 = tpu.matmul %156, %16, %cst_44 {dimension_numbers = #tpu.dot_dimension_numbers<[1], [0], [0], [1], [0, 0, 1, 1], [], []>} : vector<1x32xf32>, vector<32x32xf32>, vector<1x32xf32> -> vector<1x32xf32>
    %159 = arith.addf %157, %158 : vector<1x32xf32>
    %160 = arith.negf %159 : vector<1x32xf32>
    %161 = math.exp %160 : vector<1x32xf32>
    %cst_45 = arith.constant 1.000000e+00 : f32
    %162 = vector.broadcast %cst_45 : f32 to vector<1x32xf32>
    %163 = arith.addf %162, %161 : vector<1x32xf32>
    %164 = arith.divf %162, %163 : vector<1x32xf32>
    %165 = vector.extract_strided_slice %12 {offsets = [4, 0], sizes = [1, 32], strides = [1, 1]} : vector<8x32xf32> to vector<1x32xf32>
    %cst_46 = arith.constant dense<0.000000e+00> : vector<1x32xf32>
    %166 = tpu.matmul %156, %18, %cst_46 {dimension_numbers = #tpu.dot_dimension_numbers<[1], [0], [0], [1], [0, 0, 1, 1], [], []>} : vector<1x32xf32>, vector<32x32xf32>, vector<1x32xf32> -> vector<1x32xf32>
    %167 = arith.addf %165, %166 : vector<1x32xf32>
    %168 = arith.negf %167 : vector<1x32xf32>
    %169 = math.exp %168 : vector<1x32xf32>
    %cst_47 = arith.constant 1.000000e+00 : f32
    %170 = vector.broadcast %cst_47 : f32 to vector<1x32xf32>
    %171 = arith.addf %170, %169 : vector<1x32xf32>
    %172 = arith.divf %170, %171 : vector<1x32xf32>
    %173 = vector.extract_strided_slice %13 {offsets = [4, 0], sizes = [1, 32], strides = [1, 1]} : vector<8x32xf32> to vector<1x32xf32>
    %cst_48 = arith.constant dense<0.000000e+00> : vector<1x32xf32>
    %174 = tpu.matmul %156, %20, %cst_48 {dimension_numbers = #tpu.dot_dimension_numbers<[1], [0], [0], [1], [0, 0, 1, 1], [], []>} : vector<1x32xf32>, vector<32x32xf32>, vector<1x32xf32> -> vector<1x32xf32>
    %175 = arith.addf %173, %174 : vector<1x32xf32>
    %176 = math.tanh %175 : vector<1x32xf32>
    %177 = vector.extract_strided_slice %14 {offsets = [4, 0], sizes = [1, 32], strides = [1, 1]} : vector<8x32xf32> to vector<1x32xf32>
    %cst_49 = arith.constant dense<0.000000e+00> : vector<1x32xf32>
    %178 = tpu.matmul %156, %22, %cst_49 {dimension_numbers = #tpu.dot_dimension_numbers<[1], [0], [0], [1], [0, 0, 1, 1], [], []>} : vector<1x32xf32>, vector<32x32xf32>, vector<1x32xf32> -> vector<1x32xf32>
    %179 = arith.addf %177, %178 : vector<1x32xf32>
    %180 = arith.negf %179 : vector<1x32xf32>
    %181 = math.exp %180 : vector<1x32xf32>
    %cst_50 = arith.constant 1.000000e+00 : f32
    %182 = vector.broadcast %cst_50 : f32 to vector<1x32xf32>
    %183 = arith.addf %182, %181 : vector<1x32xf32>
    %184 = arith.divf %182, %183 : vector<1x32xf32>
    %185 = arith.mulf %172, %154 : vector<1x32xf32>
    %186 = arith.mulf %164, %176 : vector<1x32xf32>
    %187 = arith.addf %185, %186 : vector<1x32xf32>
    %188 = math.tanh %187 : vector<1x32xf32>
    %189 = arith.mulf %184, %188 : vector<1x32xf32>
    %190 = vector.extract_strided_slice %11 {offsets = [5, 0], sizes = [1, 32], strides = [1, 1]} : vector<8x32xf32> to vector<1x32xf32>
    %cst_51 = arith.constant dense<0.000000e+00> : vector<1x32xf32>
    %191 = tpu.matmul %189, %16, %cst_51 {dimension_numbers = #tpu.dot_dimension_numbers<[1], [0], [0], [1], [0, 0, 1, 1], [], []>} : vector<1x32xf32>, vector<32x32xf32>, vector<1x32xf32> -> vector<1x32xf32>
    %192 = arith.addf %190, %191 : vector<1x32xf32>
    %193 = arith.negf %192 : vector<1x32xf32>
    %194 = math.exp %193 : vector<1x32xf32>
    %cst_52 = arith.constant 1.000000e+00 : f32
    %195 = vector.broadcast %cst_52 : f32 to vector<1x32xf32>
    %196 = arith.addf %195, %194 : vector<1x32xf32>
    %197 = arith.divf %195, %196 : vector<1x32xf32>
    %198 = vector.extract_strided_slice %12 {offsets = [5, 0], sizes = [1, 32], strides = [1, 1]} : vector<8x32xf32> to vector<1x32xf32>
    %cst_53 = arith.constant dense<0.000000e+00> : vector<1x32xf32>
    %199 = tpu.matmul %189, %18, %cst_53 {dimension_numbers = #tpu.dot_dimension_numbers<[1], [0], [0], [1], [0, 0, 1, 1], [], []>} : vector<1x32xf32>, vector<32x32xf32>, vector<1x32xf32> -> vector<1x32xf32>
    %200 = arith.addf %198, %199 : vector<1x32xf32>
    %201 = arith.negf %200 : vector<1x32xf32>
    %202 = math.exp %201 : vector<1x32xf32>
    %cst_54 = arith.constant 1.000000e+00 : f32
    %203 = vector.broadcast %cst_54 : f32 to vector<1x32xf32>
    %204 = arith.addf %203, %202 : vector<1x32xf32>
    %205 = arith.divf %203, %204 : vector<1x32xf32>
    %206 = vector.extract_strided_slice %13 {offsets = [5, 0], sizes = [1, 32], strides = [1, 1]} : vector<8x32xf32> to vector<1x32xf32>
    %cst_55 = arith.constant dense<0.000000e+00> : vector<1x32xf32>
    %207 = tpu.matmul %189, %20, %cst_55 {dimension_numbers = #tpu.dot_dimension_numbers<[1], [0], [0], [1], [0, 0, 1, 1], [], []>} : vector<1x32xf32>, vector<32x32xf32>, vector<1x32xf32> -> vector<1x32xf32>
    %208 = arith.addf %206, %207 : vector<1x32xf32>
    %209 = math.tanh %208 : vector<1x32xf32>
    %210 = vector.extract_strided_slice %14 {offsets = [5, 0], sizes = [1, 32], strides = [1, 1]} : vector<8x32xf32> to vector<1x32xf32>
    %cst_56 = arith.constant dense<0.000000e+00> : vector<1x32xf32>
    %211 = tpu.matmul %189, %22, %cst_56 {dimension_numbers = #tpu.dot_dimension_numbers<[1], [0], [0], [1], [0, 0, 1, 1], [], []>} : vector<1x32xf32>, vector<32x32xf32>, vector<1x32xf32> -> vector<1x32xf32>
    %212 = arith.addf %210, %211 : vector<1x32xf32>
    %213 = arith.negf %212 : vector<1x32xf32>
    %214 = math.exp %213 : vector<1x32xf32>
    %cst_57 = arith.constant 1.000000e+00 : f32
    %215 = vector.broadcast %cst_57 : f32 to vector<1x32xf32>
    %216 = arith.addf %215, %214 : vector<1x32xf32>
    %217 = arith.divf %215, %216 : vector<1x32xf32>
    %218 = arith.mulf %205, %187 : vector<1x32xf32>
    %219 = arith.mulf %197, %209 : vector<1x32xf32>
    %220 = arith.addf %218, %219 : vector<1x32xf32>
    %221 = math.tanh %220 : vector<1x32xf32>
    %222 = arith.mulf %217, %221 : vector<1x32xf32>
    %223 = vector.extract_strided_slice %11 {offsets = [6, 0], sizes = [1, 32], strides = [1, 1]} : vector<8x32xf32> to vector<1x32xf32>
    %cst_58 = arith.constant dense<0.000000e+00> : vector<1x32xf32>
    %224 = tpu.matmul %222, %16, %cst_58 {dimension_numbers = #tpu.dot_dimension_numbers<[1], [0], [0], [1], [0, 0, 1, 1], [], []>} : vector<1x32xf32>, vector<32x32xf32>, vector<1x32xf32> -> vector<1x32xf32>
    %225 = arith.addf %223, %224 : vector<1x32xf32>
    %226 = arith.negf %225 : vector<1x32xf32>
    %227 = math.exp %226 : vector<1x32xf32>
    %cst_59 = arith.constant 1.000000e+00 : f32
    %228 = vector.broadcast %cst_59 : f32 to vector<1x32xf32>
    %229 = arith.addf %228, %227 : vector<1x32xf32>
    %230 = arith.divf %228, %229 : vector<1x32xf32>
    %231 = vector.extract_strided_slice %12 {offsets = [6, 0], sizes = [1, 32], strides = [1, 1]} : vector<8x32xf32> to vector<1x32xf32>
    %cst_60 = arith.constant dense<0.000000e+00> : vector<1x32xf32>
    %232 = tpu.matmul %222, %18, %cst_60 {dimension_numbers = #tpu.dot_dimension_numbers<[1], [0], [0], [1], [0, 0, 1, 1], [], []>} : vector<1x32xf32>, vector<32x32xf32>, vector<1x32xf32> -> vector<1x32xf32>
    %233 = arith.addf %231, %232 : vector<1x32xf32>
    %234 = arith.negf %233 : vector<1x32xf32>
    %235 = math.exp %234 : vector<1x32xf32>
    %cst_61 = arith.constant 1.000000e+00 : f32
    %236 = vector.broadcast %cst_61 : f32 to vector<1x32xf32>
    %237 = arith.addf %236, %235 : vector<1x32xf32>
    %238 = arith.divf %236, %237 : vector<1x32xf32>
    %239 = vector.extract_strided_slice %13 {offsets = [6, 0], sizes = [1, 32], strides = [1, 1]} : vector<8x32xf32> to vector<1x32xf32>
    %cst_62 = arith.constant dense<0.000000e+00> : vector<1x32xf32>
    %240 = tpu.matmul %222, %20, %cst_62 {dimension_numbers = #tpu.dot_dimension_numbers<[1], [0], [0], [1], [0, 0, 1, 1], [], []>} : vector<1x32xf32>, vector<32x32xf32>, vector<1x32xf32> -> vector<1x32xf32>
    %241 = arith.addf %239, %240 : vector<1x32xf32>
    %242 = math.tanh %241 : vector<1x32xf32>
    %243 = vector.extract_strided_slice %14 {offsets = [6, 0], sizes = [1, 32], strides = [1, 1]} : vector<8x32xf32> to vector<1x32xf32>
    %cst_63 = arith.constant dense<0.000000e+00> : vector<1x32xf32>
    %244 = tpu.matmul %222, %22, %cst_63 {dimension_numbers = #tpu.dot_dimension_numbers<[1], [0], [0], [1], [0, 0, 1, 1], [], []>} : vector<1x32xf32>, vector<32x32xf32>, vector<1x32xf32> -> vector<1x32xf32>
    %245 = arith.addf %243, %244 : vector<1x32xf32>
    %246 = arith.negf %245 : vector<1x32xf32>
    %247 = math.exp %246 : vector<1x32xf32>
    %cst_64 = arith.constant 1.000000e+00 : f32
    %248 = vector.broadcast %cst_64 : f32 to vector<1x32xf32>
    %249 = arith.addf %248, %247 : vector<1x32xf32>
    %250 = arith.divf %248, %249 : vector<1x32xf32>
    %251 = arith.mulf %238, %220 : vector<1x32xf32>
    %252 = arith.mulf %230, %242 : vector<1x32xf32>
    %253 = arith.addf %251, %252 : vector<1x32xf32>
    %254 = math.tanh %253 : vector<1x32xf32>
    %255 = arith.mulf %250, %254 : vector<1x32xf32>
    %256 = vector.extract_strided_slice %11 {offsets = [7, 0], sizes = [1, 32], strides = [1, 1]} : vector<8x32xf32> to vector<1x32xf32>
    %cst_65 = arith.constant dense<0.000000e+00> : vector<1x32xf32>
    %257 = tpu.matmul %255, %16, %cst_65 {dimension_numbers = #tpu.dot_dimension_numbers<[1], [0], [0], [1], [0, 0, 1, 1], [], []>} : vector<1x32xf32>, vector<32x32xf32>, vector<1x32xf32> -> vector<1x32xf32>
    %258 = arith.addf %256, %257 : vector<1x32xf32>
    %259 = arith.negf %258 : vector<1x32xf32>
    %260 = math.exp %259 : vector<1x32xf32>
    %cst_66 = arith.constant 1.000000e+00 : f32
    %261 = vector.broadcast %cst_66 : f32 to vector<1x32xf32>
    %262 = arith.addf %261, %260 : vector<1x32xf32>
    %263 = arith.divf %261, %262 : vector<1x32xf32>
    %264 = vector.extract_strided_slice %12 {offsets = [7, 0], sizes = [1, 32], strides = [1, 1]} : vector<8x32xf32> to vector<1x32xf32>
    %cst_67 = arith.constant dense<0.000000e+00> : vector<1x32xf32>
    %265 = tpu.matmul %255, %18, %cst_67 {dimension_numbers = #tpu.dot_dimension_numbers<[1], [0], [0], [1], [0, 0, 1, 1], [], []>} : vector<1x32xf32>, vector<32x32xf32>, vector<1x32xf32> -> vector<1x32xf32>
    %266 = arith.addf %264, %265 : vector<1x32xf32>
    %267 = arith.negf %266 : vector<1x32xf32>
    %268 = math.exp %267 : vector<1x32xf32>
    %cst_68 = arith.constant 1.000000e+00 : f32
    %269 = vector.broadcast %cst_68 : f32 to vector<1x32xf32>
    %270 = arith.addf %269, %268 : vector<1x32xf32>
    %271 = arith.divf %269, %270 : vector<1x32xf32>
    %272 = vector.extract_strided_slice %13 {offsets = [7, 0], sizes = [1, 32], strides = [1, 1]} : vector<8x32xf32> to vector<1x32xf32>
    %cst_69 = arith.constant dense<0.000000e+00> : vector<1x32xf32>
    %273 = tpu.matmul %255, %20, %cst_69 {dimension_numbers = #tpu.dot_dimension_numbers<[1], [0], [0], [1], [0, 0, 1, 1], [], []>} : vector<1x32xf32>, vector<32x32xf32>, vector<1x32xf32> -> vector<1x32xf32>
    %274 = arith.addf %272, %273 : vector<1x32xf32>
    %275 = math.tanh %274 : vector<1x32xf32>
    %276 = vector.extract_strided_slice %14 {offsets = [7, 0], sizes = [1, 32], strides = [1, 1]} : vector<8x32xf32> to vector<1x32xf32>
    %cst_70 = arith.constant dense<0.000000e+00> : vector<1x32xf32>
    %277 = tpu.matmul %255, %22, %cst_70 {dimension_numbers = #tpu.dot_dimension_numbers<[1], [0], [0], [1], [0, 0, 1, 1], [], []>} : vector<1x32xf32>, vector<32x32xf32>, vector<1x32xf32> -> vector<1x32xf32>
    %278 = arith.addf %276, %277 : vector<1x32xf32>
    %279 = arith.negf %278 : vector<1x32xf32>
    %280 = math.exp %279 : vector<1x32xf32>
    %cst_71 = arith.constant 1.000000e+00 : f32
    %281 = vector.broadcast %cst_71 : f32 to vector<1x32xf32>
    %282 = arith.addf %281, %280 : vector<1x32xf32>
    %283 = arith.divf %281, %282 : vector<1x32xf32>
    %284 = arith.mulf %271, %253 : vector<1x32xf32>
    %285 = arith.mulf %263, %275 : vector<1x32xf32>
    %286 = arith.addf %284, %285 : vector<1x32xf32>
    %287 = math.tanh %286 : vector<1x32xf32>
    %288 = arith.mulf %283, %287 : vector<1x32xf32>
    %289 = tpu.concatenate %57, %90, %123, %156, %189, %222, %255, %288 in 0 : vector<1x32xf32>, vector<1x32xf32>, vector<1x32xf32>, vector<1x32xf32>, vector<1x32xf32>, vector<1x32xf32>, vector<1x32xf32>, vector<1x32xf32> -> vector<8x32xf32>
    %c0_72 = arith.constant 0 : index
    %c0_73 = arith.constant 0 : index
    %290 = vector.load %arg5[%c0_72, %c0_73] : memref<32x8xf32, #tpu.memory_space<vmem>>, vector<32x8xf32>
    %cst_74 = arith.constant dense<0.000000e+00> : vector<8x8xf32>
    %291 = tpu.matmul %289, %290, %cst_74 {dimension_numbers = #tpu.dot_dimension_numbers<[1], [0], [0], [1], [0, 0, 1, 1], [], []>} : vector<8x32xf32>, vector<32x8xf32>, vector<8x8xf32> -> vector<8x8xf32>
    %c0_75 = arith.constant 0 : index
    %c0_76 = arith.constant 0 : index
    %292 = vector.load %arg6[%c0_75, %c0_76] : memref<1x8xf32, #tpu.memory_space<vmem>>, vector<1x8xf32>
    %293 = vector.broadcast %292 : vector<1x8xf32> to vector<8x8xf32>
    %294 = arith.addf %291, %293 : vector<8x8xf32>
    %cst_77 = arith.constant dense<0xFF800000> : vector<8xf32>
    %295 = vector.multi_reduction <maximumf>, %294, %cst_77 [1] : vector<8x8xf32> to vector<8xf32>
    %296 = vector.shape_cast %295 : vector<8xf32> to vector<8x1xf32>
    %297 = vector.broadcast %296 : vector<8x1xf32> to vector<8x8xf32>
    %298 = arith.subf %294, %297 : vector<8x8xf32>
    %299 = math.exp %298 : vector<8x8xf32>
    %cst_78 = arith.constant dense<0.000000e+00> : vector<8xf32>
    %300 = vector.multi_reduction <add>, %299, %cst_78 [1] : vector<8x8xf32> to vector<8xf32>
    %301 = vector.shape_cast %300 : vector<8xf32> to vector<8x1xf32>
    %302 = math.log %301 : vector<8x1xf32>
    %303 = arith.addf %296, %302 : vector<8x1xf32>
    %304 = vector.broadcast %303 : vector<8x1xf32> to vector<8x8xf32>
    %305 = arith.subf %294, %304 : vector<8x8xf32>
    %c0_79 = arith.constant 0 : index
    %c0_80 = arith.constant 0 : index
    %306 = vector.load %arg7[%c0_79, %c0_80] : memref<8x8xf32, #tpu.memory_space<vmem>>, vector<8x8xf32>
    tpu.vector_store %arg7[%c0_79, %c0_80], %305 {strides = array<i32>} : memref<8x8xf32, #tpu.memory_space<vmem>>, vector<8x8xf32>,
    return
  }
  func.func @transform_0(%arg0: i32) -> (i32, i32) {
    %c0_i32 = arith.constant 0 : i32
    %c0_i32_0 = arith.constant 0 : i32
    %c0_i32_1 = arith.constant 0 : i32
    return %c0_i32, %c0_i32_0 : i32, i32
  }
  func.func @transform_1(%arg0: i32) -> (i32, i32) {
    %c0_i32 = arith.constant 0 : i32
    %c0_i32_0 = arith.constant 0 : i32
    %c0_i32_1 = arith.constant 0 : i32
    return %c0_i32, %c0_i32_0 : i32, i32
  }
  func.func @transform_2(%arg0: i32) -> (i32, i32, i32) {
    %c0_i32 = arith.constant 0 : i32
    %c0_i32_0 = arith.constant 0 : i32
    %c0_i32_1 = arith.constant 0 : i32
    %c0_i32_2 = arith.constant 0 : i32
    return %c0_i32, %c0_i32_0, %c0_i32_1 : i32, i32, i32
  }
  func.func @transform_3(%arg0: i32) -> (i32, i32) {
    %c0_i32 = arith.constant 0 : i32
    %c0_i32_0 = arith.constant 0 : i32
    %c0_i32_1 = arith.constant 0 : i32
    return %c0_i32, %c0_i32_0 : i32, i32
  }
  func.func @transform_4(%arg0: i32) -> (i32, i32) {
    %c0_i32 = arith.constant 0 : i32
    %c0_i32_0 = arith.constant 0 : i32
    %c0_i32_1 = arith.constant 0 : i32
    return %c0_i32, %c0_i32_0 : i32, i32
  }
  func.func @transform_5(%arg0: i32) -> (i32, i32) {
    %c0_i32 = arith.constant 0 : i32
    %c0_i32_0 = arith.constant 0 : i32
    %c0_i32_1 = arith.constant 0 : i32
    return %c0_i32, %c0_i32_0 : i32, i32
  }
  func.func @transform_6(%arg0: i32) -> (i32, i32) {
    %c0_i32 = arith.constant 0 : i32
    %c0_i32_0 = arith.constant 0 : i32
    %c0_i32_1 = arith.constant 0 : i32
    return %c0_i32, %c0_i32_0 : i32, i32
  }
}

</mosaic_0001>

<llo_original>
// kernel: lstm_tagger_forward.1
$region0: #{lstm_tagger_forward.1}
  #allocation0 [shape = 'u32[]', space=smem, size = 0x4, offset = 0x4, fixed_abs, tag = 'smem constant byte address 0x4 - core index']
  #allocation1 [shape = 'u32[72,128]{1,0:T(1,128)}', space=vmem, size = 0x9000, scoped, tag = 'internal scratch']
  %s0 = inlined_call_operand.vmem [shape: s32[8,1], index: 0, kind: input, shape index: {}]
  %s1 = inlined_call_operand.vmem [shape: f32[16,128], index: 1, kind: input, shape index: {}]
  %s2 = inlined_call_operand.hbm [shape: f32[4,32,32], index: 2, kind: input, shape index: {}]
  %s3 = inlined_call_operand.vmem [shape: f32[1,128], index: 3, kind: input, shape index: {}]
  %s4 = inlined_call_operand.vmem [shape: f32[32,8], index: 4, kind: input, shape index: {}]
  %s5 = inlined_call_operand.vmem [shape: f32[1,8], index: 5, kind: input, shape index: {}]
  %s6 = inlined_call_operand.hbm [shape: f32[8,8], index: 6, kind: output, shape index: {}]
  %s7 = sld [smem:[#allocation0]]
  $region38: #{lstm_tagger_forward.1} parent=0
    _
  %s9 = ssub.s32 1, %s7
  %s10 = scalar_select 0, %s9, %s7
  $region1: #{lstm_tagger_forward.1} parent=0
    #allocation2 [shape = 'u8[65536]{0}', space=vmem, size = 0x10000, scoped, tag = 'input window, operand 2, single buffered']
    #allocation3 [shape = 's32[1]{0}', space=sflag, size = 0x4, scoped, tag = 'scoped memory for lstm_tagger_forward.1']
    #allocation4 [shape = 's32[1]{0}', space=sflag, size = 0x4, scoped, tag = 'scoped memory for lstm_tagger_forward.1']
    #allocation5 [shape = 'u8[4096]{0}', space=vmem, size = 0x1000, scoped, tag = 'output window, operand 0, single buffered']
    %11 = vsyncpa [#allocation3], 0
    %12 = vsyncpa [#allocation4], 0
    // Predicated region
    $region2: #{lstm_tagger_forward.1} parent=1 // pred_check
      _
    $region3: #{lstm_tagger_forward.1} parent=1 // pred_check_branch
      %14 = sbr.rel (0) target = $region5
    $region4: #{lstm_tagger_forward.1} parent=1 // pred_region
      _
    $region5: #{lstm_tagger_forward.1} parent=1 // pred_fallthru
      _
    // Predicated region
    $region6: #{lstm_tagger_forward.1} parent=1 // pred_check
      _
    $region7: #{lstm_tagger_forward.1} parent=1 // pred_check_branch
      %16 = sbr.rel (0) target = $region9
    $region8: #{lstm_tagger_forward.1} parent=1 // pred_region
      _
    $region9: #{lstm_tagger_forward.1} parent=1 // pred_fallthru
      _
    // Predicated region
    $region10: #{lstm_tagger_forward.1} parent=1 // pred_check
      _
    $region11: #{lstm_tagger_forward.1} parent=1 // pred_check_branch
      %18 = sbr.rel (0) target = $region13
    $region12: #{lstm_tagger_forward.1} parent=1 // pred_region
      %20 = vsyncadd [#allocation3], 0
      %s21 = sshll.u32 %s2, 4
      %s22 = int_to_ptr.hbm [resolvable:$true] %s21
      %s23 = sshll.u32 [#allocation2], 4
      %s24 = int_to_ptr.vmem [resolvable:$true] %s23
      %29 = dma.hbm_to_vmem [thread:$0]  %s22, 2048, %s24, [#allocation3], 128, 128, 8
    $region13: #{lstm_tagger_forward.1} parent=1 // pred_fallthru
      _
    // Predicated region
    $region14: #{lstm_tagger_forward.1} parent=1 // pred_check
      _
    $region15: #{lstm_tagger_forward.1} parent=1 // pred_check_branch
      %31 = sbr.rel (0) target = $region17
    $region16: #{lstm_tagger_forward.1} parent=1 // pred_region
      _
    $region17: #{lstm_tagger_forward.1} parent=1 // pred_fallthru
      _
    // Predicated region
    $region18: #{lstm_tagger_forward.1} parent=1 // pred_check
      _
    $region19: #{lstm_tagger_forward.1} parent=1 // pred_check_branch
      %33 = sbr.rel (0) target = $region21
    $region20: #{lstm_tagger_forward.1} parent=1 // pred_region
      _
    $region21: #{lstm_tagger_forward.1} parent=1 // pred_fallthru
      _
    // Predicated region
    $region22: #{lstm_tagger_forward.1} parent=1 // pred_check
      _
    $region23: #{lstm_tagger_forward.1} parent=1 // pred_check_branch
      %35 = sbr.rel (0) target = $region25
    $region24: #{lstm_tagger_forward.1} parent=1 // pred_region
      _
    $region25: #{lstm_tagger_forward.1} parent=1 // pred_fallthru
      _
    // Predicated region
    $region26: #{lstm_tagger_forward.1} parent=1 // pred_check
      _
    $region27: #{lstm_tagger_forward.1} parent=1 // pred_check_branch
      %37 = sbr.rel (0) target = $region29
    $region28: #{lstm_tagger_forward.1} parent=1 // pred_region
      %39 = dma.done [#allocation3], 2048
    $region29: #{lstm_tagger_forward.1} parent=1 // pred_fallthru
      _
    %v40 = vld [vmem:[%s0] sm:$0xff]
    %v41 = vlaneseq
    %v42 = vand.u32 %v41, 127
    %43 = vset.pattern.permute.xlu0 0
    %44 = vperm.xlu0 %43, %v40
    %v45 = vpop.permute.xlu0 %44
    %vm46 = vcmp.eq.s32.totalorder %v42, %v45
    %v47 = vsel %vm46, 1, 0
    %v48 = vcvt.s32.f32 %v47
    %v49 = vld [vmem:[%s1] sm:$0xff]
    %v50 = vld [vmem:[%s1 + $0x8] sm:$0xff]
    %v51 = vld [vmem:[%s3] sm:$0x1]
    %v53 = vperm.slane %v51, 0
    %vm55 = vcmask 130048
    %v57 = vsel %vm55, %v48, 0
    %59 = vmatpush.msra.mxu0 0.0
    %60 = vmatpush.msra.mxu0 0.0
    %61 = vmatpush.msra.mxu0 0.0
    %62 = vmatpush.msra.mxu0 0.0
    %63 = vmatpush.msra.mxu0 0.0
    %64 = vmatpush.msra.mxu0 0.0
    %65 = vmatpush.msra.mxu0 0.0
    %66 = vmatpush.msra.mxu0 0.0
    %67 = vmatpush.msra.mxu0 0.0
    %68 = vmatpush.msra.mxu0 0.0
    %69 = vmatpush.msra.mxu0 0.0
    %70 = vmatpush.msra.mxu0 0.0
    %71 = vmatpush.msra.mxu0 0.0
    %72 = vmatpush.msra.mxu0 0.0
    %73 = vmatpush.msra.mxu0 %v50
    %74 = vmatpush.msra.mxu0 %v49
    %75 = vmatmul.f32.gmra.mxu0 %v57
    %v76 = vpop.f32.mrf.mxu0
    %v77 = vadd.f32 %v53, %v76
    %78 = vdwg.mxu0
    %v79 = vld [vmem:[#allocation2] sm:$0xff]
    %v80 = vld [vmem:[#allocation2 + $0x8] sm:$0xff]
    %v81 = vld [vmem:[#allocation2 + $0x10] sm:$0xff]
    %v82 = vld [vmem:[#allocation2 + $0x18] sm:$0xff]
    %s83 = scalar_lea.vmem [#allocation2], 32
    %v84 = vld [vmem:[%s83] sm:$0xff]
    %v85 = vld [vmem:[%s83 + $0x8] sm:$0xff]
    %v86 = vld [vmem:[%s83 + $0x10] sm:$0xff]
    %v87 = vld [vmem:[%s83 + $0x18] sm:$0xff]
    %s88 = scalar_lea.vmem [#allocation2], 64
    %v89 = vld [vmem:[%s88] sm:$0xff]
    %v90 = vld [vmem:[%s88 + $0x8] sm:$0xff]
    %v91 = vld [vmem:[%s88 + $0x10] sm:$0xff]
    %v92 = vld [vmem:[%s88 + $0x18] sm:$0xff]
    %s93 = scalar_lea.vmem [#allocation2], 96
    %v94 = vld [vmem:[%s93] sm:$0xff]
    %v95 = vld [vmem:[%s93 + $0x8] sm:$0xff]
    %v96 = vld [vmem:[%s93 + $0x10] sm:$0xff]
    %v97 = vld [vmem:[%s93 + $0x18] sm:$0xff]
    %vm98 = vcmask 261120
    %v100 = vsel %vm98, 0.0, 0
    %102 = vmatpush.msra.mxu0 0.0
    %103 = vmatpush.msra.mxu0 0.0
    %104 = vmatpush.msra.mxu0 0.0
    %105 = vmatpush.msra.mxu0 0.0
    %106 = vmatpush.msra.mxu0 0.0
    %107 = vmatpush.msra.mxu0 0.0
    %108 = vmatpush.msra.mxu0 0.0
    %109 = vmatpush.msra.mxu0 0.0
    %110 = vmatpush.msra.mxu0 0.0
    %111 = vmatpush.msra.mxu0 0.0
    %112 = vmatpush.msra.mxu0 0.0
    %113 = vmatpush.msra.mxu0 0.0
    %114 = vmatpush.msra.mxu0 %v82
    %115 = vmatpush.msra.mxu0 %v81
    %116 = vmatpush.msra.mxu0 %v80
    %117 = vmatpush.msra.mxu0 %v79
    %118 = vmatmul.f32.gmra.mxu0 %v100
    %v119 = vpop.f32.mrf.mxu0
    %v120 = vadd.f32 0.0, %v119
    %121 = vdwg.mxu0
    %v122 = vadd.f32 %v77, %v120
    %v123 = vxor.u32 %v122, 2147483648
    %v124 = vmul.f32 %v123, 1.442695
    %v125 = vpow.pop %v124
    %v126 = vadd.f32 %v125, 1.0
    %v127 = vrcp.pop %v126
    %v128 = vmul.f32 %v126, %v127
    %v129 = vsub.f32 1.0, %v128
    %v130 = vmul.f32 %v127, %v129
    %v131 = vadd.f32 %v127, %v130
    %vm132 = vweird.f32 %v126
    %vm133 = vweird.f32 %v127
    %vm134 = vmor %vm132, %vm133
    %v135 = vsel %vm134, %v127, %v131
    %v136 = vand.u32 2147483647, %v126
    %vm137 = vcmp.eq.f32.partialorder %v136, 8.507059e+37
    %v138 = vand.u32 %v126, 2147483648
    %v139 = vor.u32 1.1754944e-38, %v138
    %v140 = vsel %vm137, %v139, %v135
    %v141 = vmul.f32 1.0, %v140
    %142 = vmatpush.msra.mxu0 0.0
    %143 = vmatpush.msra.mxu0 0.0
    %144 = vmatpush.msra.mxu0 0.0
    %145 = vmatpush.msra.mxu0 0.0
    %146 = vmatpush.msra.mxu0 0.0
    %147 = vmatpush.msra.mxu0 0.0
    %148 = vmatpush.msra.mxu0 0.0
    %149 = vmatpush.msra.mxu0 0.0
    %150 = vmatpush.msra.mxu0 0.0
    %151 = vmatpush.msra.mxu0 0.0
    %152 = vmatpush.msra.mxu0 0.0
    %153 = vmatpush.msra.mxu0 0.0
    %154 = vmatpush.msra.mxu0 %v87
    %155 = vmatpush.msra.mxu0 %v86
    %156 = vmatpush.msra.mxu0 %v85
    %157 = vmatpush.msra.mxu0 %v84
    %158 = vmatmul.f32.gmra.mxu0 %v100
    %v159 = vpop.f32.mrf.mxu0
    %v160 = vadd.f32 0.0, %v159
    %161 = vdwg.mxu0
    %163 = vrot.lane.b32.xlu0 %v160, 32
    %v164 = vpop.permute.xlu0 %163
    %v166 = vadd.f32 %v77, %v164
    %v167 = vxor.u32 %v166, 2147483648
    %v168 = vmul.f32 %v167, 1.442695
    %v169 = vpow.pop %v168
    %v170 = vadd.f32 %v169, 1.0
    %v171 = vrcp.pop %v170
    %v172 = vmul.f32 %v170, %v171
    %v173 = vsub.f32 1.0, %v172
    %v174 = vmul.f32 %v171, %v173
    %v175 = vadd.f32 %v171, %v174
    %vm176 = vweird.f32 %v170
    %vm177 = vweird.f32 %v171
    %vm178 = vmor %vm176, %vm177
    %v179 = vsel %vm178, %v171, %v175
    %v180 = vand.u32 2147483647, %v170
    %vm181 = vcmp.eq.f32.partialorder %v180, 8.507059e+37
    %v182 = vand.u32 %v170, 2147483648
    %v183 = vor.u32 1.1754944e-38, %v182
    %v184 = vsel %vm181, %v183, %v179
    %v185 = vmul.f32 1.0, %v184
    %186 = vmatpush.msra.mxu0 0.0
    %187 = vmatpush.msra.mxu0 0.0
    %188 = vmatpush.msra.mxu0 0.0
    %189 = vmatpush.msra.mxu0 0.0
    %190 = vmatpush.msra.mxu0 0.0
    %191 = vmatpush.msra.mxu0 0.0
    %192 = vmatpush.msra.mxu0 0.0
    %193 = vmatpush.msra.mxu0 0.0
    %194 = vmatpush.msra.mxu0 0.0
    %195 = vmatpush.msra.mxu0 0.0
    %196 = vmatpush.msra.mxu0 0.0
    %197 = vmatpush.msra.mxu0 0.0
    %198 = vmatpush.msra.mxu0 %v92
    %199 = vmatpush.msra.mxu0 %v91
    %200 = vmatpush.msra.mxu0 %v90
    %201 = vmatpush.msra.mxu0 %v89
    %202 = vmatmul.f32.gmra.mxu0 %v100
    %v203 = vpop.f32.mrf.mxu0
    %v204 = vadd.f32 0.0, %v203
    %205 = vdwg.mxu0
    %207 = vrot.lane.b32.xlu0 %v204, 64
    %v208 = vpop.permute.xlu0 %207
    %v210 = vadd.f32 %v77, %v208
    %v211 = vtanh.pop %v210
    %212 = vmatpush.msra.mxu0 0.0
    %213 = vmatpush.msra.mxu0 0.0
    %214 = vmatpush.msra.mxu0 0.0
    %215 = vmatpush.msra.mxu0 0.0
    %216 = vmatpush.msra.mxu0 0.0
    %217 = vmatpush.msra.mxu0 0.0
    %218 = vmatpush.msra.mxu0 0.0
    %219 = vmatpush.msra.mxu0 0.0
    %220 = vmatpush.msra.mxu0 0.0
    %221 = vmatpush.msra.mxu0 0.0
    %222 = vmatpush.msra.mxu0 0.0
    %223 = vmatpush.msra.mxu0 0.0
    %224 = vmatpush.msra.mxu0 %v97
    %225 = vmatpush.msra.mxu0 %v96
    %226 = vmatpush.msra.mxu0 %v95
    %227 = vmatpush.msra.mxu0 %v94
    %228 = vmatmul.f32.gmra.mxu0 %v100
    %v229 = vpop.f32.mrf.mxu0
    %v230 = vadd.f32 0.0, %v229
    %231 = vdwg.mxu0
    %233 = vrot.lane.b32.xlu0 %v230, 96
    %v234 = vpop.permute.xlu0 %233
    %v236 = vadd.f32 %v77, %v234
    %v237 = vxor.u32 %v236, 2147483648
    %v238 = vmul.f32 %v237, 1.442695
    %v239 = vpow.pop %v238
    %v240 = vadd.f32 %v239, 1.0
    %v241 = vrcp.pop %v240
    %v242 = vmul.f32 %v240, %v241
    %v243 = vsub.f32 1.0, %v242
    %v244 = vmul.f32 %v241, %v243
    %v245 = vadd.f32 %v241, %v244
    %vm246 = vweird.f32 %v240
    %vm247 = vweird.f32 %v241
    %vm248 = vmor %vm246, %vm247
    %v249 = vsel %vm248, %v241, %v245
    %v250 = vand.u32 2147483647, %v240
    %vm251 = vcmp.eq.f32.partialorder %v250, 8.507059e+37
    %v252 = vand.u32 %v240, 2147483648
    %v253 = vor.u32 1.1754944e-38, %v252
    %v254 = vsel %vm251, %v253, %v249
    %v255 = vmul.f32 1.0, %v254
    %v256 = vmul.f32 %v185, 0.0
    %258 = vrot.lane.b32.xlu0 %v211, 64
    %v259 = vpop.permute.xlu0 %258
    %v261 = vmul.f32 %v141, %v259
    %263 = vrot.lane.b32.xlu0 %v261, 32
    %v264 = vpop.permute.xlu0 %263
    %v266 = vadd.f32 %v256, %v264
    %v267 = vtanh.pop %v266
    %269 = vrot.lane.b32.xlu0 %v267, 64
    %v270 = vpop.permute.xlu0 %269
    %v272 = vmul.f32 %v255, %v270
    %274 = vrot.lane.b32.xlu0 %v272, 32
    %v275 = vpop.permute.xlu0 %274
    %v276 = vsel %vm98, %v275, 0
    %278 = vmatpush.msra.mxu0 0.0
    %279 = vmatpush.msra.mxu0 0.0
    %280 = vmatpush.msra.mxu0 0.0
    %281 = vmatpush.msra.mxu0 0.0
    %282 = vmatpush.msra.mxu0 0.0
    %283 = vmatpush.msra.mxu0 0.0
    %284 = vmatpush.msra.mxu0 0.0
    %285 = vmatpush.msra.mxu0 0.0
    %286 = vmatpush.msra.mxu0 0.0
    %287 = vmatpush.msra.mxu0 0.0
    %288 = vmatpush.msra.mxu0 0.0
    %289 = vmatpush.msra.mxu0 0.0
    %290 = vmatpush.msra.mxu0 %v82
    %291 = vmatpush.msra.mxu0 %v81
    %292 = vmatpush.msra.mxu0 %v80
    %293 = vmatpush.msra.mxu0 %v79
    %294 = vmatmul.f32.gmra.mxu0 %v276
    %v295 = vpop.f32.mrf.mxu0
    %v296 = vadd.f32 0.0, %v295
    %297 = vdwg.mxu0
    %v299 = vrot.slane %v296, 7
    %v301 = vadd.f32 %v77, %v299
    %v302 = vxor.u32 %v301, 2147483648
    %v303 = vmul.f32 %v302, 1.442695
    %v304 = vpow.pop %v303
    %v305 = vadd.f32 %v304, 1.0
    %v306 = vrcp.pop %v305
    %v307 = vmul.f32 %v305, %v306
    %v308 = vsub.f32 1.0, %v307
    %v309 = vmul.f32 %v306, %v308
    %v310 = vadd.f32 %v306, %v309
    %vm311 = vweird.f32 %v305
    %vm312 = vweird.f32 %v306
    %vm313 = vmor %vm311, %vm312
    %v314 = vsel %vm313, %v306, %v310
    %v315 = vand.u32 2147483647, %v305
    %vm316 = vcmp.eq.f32.partialorder %v315, 8.507059e+37
    %v317 = vand.u32 %v305, 2147483648
    %v318 = vor.u32 1.1754944e-38, %v317
    %v319 = vsel %vm316, %v318, %v314
    %v320 = vmul.f32 1.0, %v319
    %321 = vmatpush.msra.mxu0 0.0
    %322 = vmatpush.msra.mxu0 0.0
    %323 = vmatpush.msra.mxu0 0.0
    %324 = vmatpush.msra.mxu0 0.0
    %325 = vmatpush.msra.mxu0 0.0
    %326 = vmatpush.msra.mxu0 0.0
    %327 = vmatpush.msra.mxu0 0.0
    %328 = vmatpush.msra.mxu0 0.0
    %329 = vmatpush.msra.mxu0 0.0
    %330 = vmatpush.msra.mxu0 0.0
    %331 = vmatpush.msra.mxu0 0.0
    %332 = vmatpush.msra.mxu0 0.0
    %333 = vmatpush.msra.mxu0 %v87
    %334 = vmatpush.msra.mxu0 %v86
    %335 = vmatpush.msra.mxu0 %v85
    %336 = vmatpush.msra.mxu0 %v84
    %337 = vmatmul.f32.gmra.mxu0 %v276
    %v338 = vpop.f32.mrf.mxu0
    %v339 = vadd.f32 0.0, %v338
    %340 = vdwg.mxu0
    %v342 = vrot.slane %v339, 7
    %343 = vrot.lane.b32.xlu0 %v342, 32
    %v344 = vpop.permute.xlu0 %343
    %v346 = vadd.f32 %v77, %v344
    %v347 = vxor.u32 %v346, 2147483648
    %v348 = vmul.f32 %v347, 1.442695
    %v349 = vpow.pop %v348
    %v350 = vadd.f32 %v349, 1.0
    %v351 = vrcp.pop %v350
    %v352 = vmul.f32 %v350, %v351
    %v353 = vsub.f32 1.0, %v352
    %v354 = vmul.f32 %v351, %v353
    %v355 = vadd.f32 %v351, %v354
    %vm356 = vweird.f32 %v350
    %vm357 = vweird.f32 %v351
    %vm358 = vmor %vm356, %vm357
    %v359 = vsel %vm358, %v351, %v355
    %v360 = vand.u32 2147483647, %v350
    %vm361 = vcmp.eq.f32.partialorder %v360, 8.507059e+37
    %v362 = vand.u32 %v350, 2147483648
    %v363 = vor.u32 1.1754944e-38, %v362
    %v364 = vsel %vm361, %v363, %v359
    %v365 = vmul.f32 1.0, %v364
    %366 = vmatpush.msra.mxu0 0.0
    %367 = vmatpush.msra.mxu0 0.0
    %368 = vmatpush.msra.mxu0 0.0
    %369 = vmatpush.msra.mxu0 0.0
    %370 = vmatpush.msra.mxu0 0.0
    %371 = vmatpush.msra.mxu0 0.0
    %372 = vmatpush.msra.mxu0 0.0
    %373 = vmatpush.msra.mxu0 0.0
    %374 = vmatpush.msra.mxu0 0.0
    %375 = vmatpush.msra.mxu0 0.0
    %376 = vmatpush.msra.mxu0 0.0
    %377 = vmatpush.msra.mxu0 0.0
    %378 = vmatpush.msra.mxu0 %v92
    %379 = vmatpush.msra.mxu0 %v91
    %380 = vmatpush.msra.mxu0 %v90
    %381 = vmatpush.msra.mxu0 %v89
    %382 = vmatmul.f32.gmra.mxu0 %v276
    %v383 = vpop.f32.mrf.mxu0
    %v384 = vadd.f32 0.0, %v383
    %385 = vdwg.mxu0
    %v387 = vrot.slane %v384, 7
    %388 = vrot.lane.b32.xlu0 %v387, 64
    %v389 = vpop.permute.xlu0 %388
    %v391 = vadd.f32 %v77, %v389
    %v392 = vtanh.pop %v391
    %393 = vmatpush.msra.mxu0 0.0
    %394 = vmatpush.msra.mxu0 0.0
    %395 = vmatpush.msra.mxu0 0.0
    %396 = vmatpush.msra.mxu0 0.0
    %397 = vmatpush.msra.mxu0 0.0
    %398 = vmatpush.msra.mxu0 0.0
    %399 = vmatpush.msra.mxu0 0.0
    %400 = vmatpush.msra.mxu0 0.0
    %401 = vmatpush.msra.mxu0 0.0
    %402 = vmatpush.msra.mxu0 0.0
    %403 = vmatpush.msra.mxu0 0.0
    %404 = vmatpush.msra.mxu0 0.0
    %405 = vmatpush.msra.mxu0 %v97
    %406 = vmatpush.msra.mxu0 %v96
    %407 = vmatpush.msra.mxu0 %v95
    %408 = vmatpush.msra.mxu0 %v94
    %409 = vmatmul.f32.gmra.mxu0 %v276
    %v410 = vpop.f32.mrf.mxu0
    %v411 = vadd.f32 0.0, %v410
    %412 = vdwg.mxu0
    %v414 = vrot.slane %v411, 7
    %415 = vrot.lane.b32.xlu0 %v414, 96
    %v416 = vpop.permute.xlu0 %415
    %v418 = vadd.f32 %v77, %v416
    %v419 = vxor.u32 %v418, 2147483648
    %v420 = vmul.f32 %v419, 1.442695
    %v421 = vpow.pop %v420
    %v422 = vadd.f32 %v421, 1.0
    %v423 = vrcp.pop %v422
    %v424 = vmul.f32 %v422, %v423
    %v425 = vsub.f32 1.0, %v424
    %v426 = vmul.f32 %v423, %v425
    %v427 = vadd.f32 %v423, %v426
    %vm428 = vweird.f32 %v422
    %vm429 = vweird.f32 %v423
    %vm430 = vmor %vm428, %vm429
    %v431 = vsel %vm430, %v423, %v427
    %v432 = vand.u32 2147483647, %v422
    %vm433 = vcmp.eq.f32.partialorder %v432, 8.507059e+37
    %v434 = vand.u32 %v422, 2147483648
    %v435 = vor.u32 1.1754944e-38, %v434
    %v436 = vsel %vm433, %v435, %v431
    %v437 = vmul.f32 1.0, %v436
    %v439 = vrot.slane %v266, 7
    %v441 = vmul.f32 %v365, %v439
    %443 = vrot.lane.b32.xlu0 %v392, 64
    %v444 = vpop.permute.xlu0 %443
    %v446 = vmul.f32 %v320, %v444
    %448 = vrot.lane.b32.xlu0 %v446, 32
    %v449 = vpop.permute.xlu0 %448
    %v451 = vadd.f32 %v441, %v449
    %v452 = vtanh.pop %v451
    %454 = vrot.lane.b32.xlu0 %v452, 64
    %v455 = vpop.permute.xlu0 %454
    %v457 = vmul.f32 %v437, %v455
    %v459 = vrot.slane %v457, 1
    %460 = vrot.lane.b32.xlu0 %v459, 32
    %v461 = vpop.permute.xlu0 %460
    %v462 = vsel %vm98, %v461, 0
    %464 = vmatpush.msra.mxu0 0.0
    %465 = vmatpush.msra.mxu0 0.0
    %466 = vmatpush.msra.mxu0 0.0
    %467 = vmatpush.msra.mxu0 0.0
    %468 = vmatpush.msra.mxu0 0.0
    %469 = vmatpush.msra.mxu0 0.0
    %470 = vmatpush.msra.mxu0 0.0
    %471 = vmatpush.msra.mxu0 0.0
    %472 = vmatpush.msra.mxu0 0.0
    %473 = vmatpush.msra.mxu0 0.0
    %474 = vmatpush.msra.mxu0 0.0
    %475 = vmatpush.msra.mxu0 0.0
    %476 = vmatpush.msra.mxu0 %v82
    %477 = vmatpush.msra.mxu0 %v81
    %478 = vmatpush.msra.mxu0 %v80
    %479 = vmatpush.msra.mxu0 %v79
    %480 = vmatmul.f32.gmra.mxu0 %v462
    %v481 = vpop.f32.mrf.mxu0
    %v482 = vadd.f32 0.0, %v481
    %483 = vdwg.mxu0
    %v485 = vrot.slane %v482, 6
    %v487 = vadd.f32 %v77, %v485
    %v488 = vxor.u32 %v487, 2147483648
    %v489 = vmul.f32 %v488, 1.442695
    %v490 = vpow.pop %v489
    %v491 = vadd.f32 %v490, 1.0
    %v492 = vrcp.pop %v491
    %v493 = vmul.f32 %v491, %v492
    %v494 = vsub.f32 1.0, %v493
    %v495 = vmul.f32 %v492, %v494
    %v496 = vadd.f32 %v492, %v495
    %vm497 = vweird.f32 %v491
    %vm498 = vweird.f32 %v492
    %vm499 = vmor %vm497, %vm498
    %v500 = vsel %vm499, %v492, %v496
    %v501 = vand.u32 2147483647, %v491
    %vm502 = vcmp.eq.f32.partialorder %v501, 8.507059e+37
    %v503 = vand.u32 %v491, 2147483648
    %v504 = vor.u32 1.1754944e-38, %v503
    %v505 = vsel %vm502, %v504, %v500
    %v506 = vmul.f32 1.0, %v505
    %507 = vmatpush.msra.mxu0 0.0
    %508 = vmatpush.msra.mxu0 0.0
    %509 = vmatpush.msra.mxu0 0.0
    %510 = vmatpush.msra.mxu0 0.0
    %511 = vmatpush.msra.mxu0 0.0
    %512 = vmatpush.msra.mxu0 0.0
    %513 = vmatpush.msra.mxu0 0.0
    %514 = vmatpush.msra.mxu0 0.0
    %515 = vmatpush.msra.mxu0 0.0
    %516 = vmatpush.msra.mxu0 0.0
    %517 = vmatpush.msra.mxu0 0.0
    %518 = vmatpush.msra.mxu0 0.0
    %519 = vmatpush.msra.mxu0 %v87
    %520 = vmatpush.msra.mxu0 %v86
    %521 = vmatpush.msra.mxu0 %v85
    %522 = vmatpush.msra.mxu0 %v84
    %523 = vmatmul.f32.gmra.mxu0 %v462
    %v524 = vpop.f32.mrf.mxu0
    %v525 = vadd.f32 0.0, %v524
    %526 = vdwg.mxu0
    %v528 = vrot.slane %v525, 6
    %529 = vrot.lane.b32.xlu0 %v528, 32
    %v530 = vpop.permute.xlu0 %529
    %v532 = vadd.f32 %v77, %v530
    %v533 = vxor.u32 %v532, 2147483648
    %v534 = vmul.f32 %v533, 1.442695
    %v535 = vpow.pop %v534
    %v536 = vadd.f32 %v535, 1.0
    %v537 = vrcp.pop %v536
    %v538 = vmul.f32 %v536, %v537
    %v539 = vsub.f32 1.0, %v538
    %v540 = vmul.f32 %v537, %v539
    %v541 = vadd.f32 %v537, %v540
    %vm542 = vweird.f32 %v536
    %vm543 = vweird.f32 %v537
    %vm544 = vmor %vm542, %vm543
    %v545 = vsel %vm544, %v537, %v541
    %v546 = vand.u32 2147483647, %v536
    %vm547 = vcmp.eq.f32.partialorder %v546, 8.507059e+37
    %v548 = vand.u32 %v536, 2147483648
    %v549 = vor.u32 1.1754944e-38, %v548
    %v550 = vsel %vm547, %v549, %v545
    %v551 = vmul.f32 1.0, %v550
    %552 = vmatpush.msra.mxu0 0.0
    %553 = vmatpush.msra.mxu0 0.0
    %554 = vmatpush.msra.mxu0 0.0
    %555 = vmatpush.msra.mxu0 0.0
    %556 = vmatpush.msra.mxu0 0.0
    %557 = vmatpush.msra.mxu0 0.0
    %558 = vmatpush.msra.mxu0 0.0
    %559 = vmatpush.msra.mxu0 0.0
    %560 = vmatpush.msra.mxu0 0.0
    %561 = vmatpush.msra.mxu0 0.0
    %562 = vmatpush.msra.mxu0 0.0
    %563 = vmatpush.msra.mxu0 0.0
    %564 = vmatpush.msra.mxu0 %v92
    %565 = vmatpush.msra.mxu0 %v91
    %566 = vmatpush.msra.mxu0 %v90
    %567 = vmatpush.msra.mxu0 %v89
    %568 = vmatmul.f32.gmra.mxu0 %v462
    %v569 = vpop.f32.mrf.mxu0
    %v570 = vadd.f32 0.0, %v569
    %571 = vdwg.mxu0
    %v573 = vrot.slane %v570, 6
    %574 = vrot.lane.b32.xlu0 %v573, 64
    %v575 = vpop.permute.xlu0 %574
    %v577 = vadd.f32 %v77, %v575
    %v578 = vtanh.pop %v577
    %579 = vmatpush.msra.mxu0 0.0
    %580 = vmatpush.msra.mxu0 0.0
    %581 = vmatpush.msra.mxu0 0.0
    %582 = vmatpush.msra.mxu0 0.0
    %583 = vmatpush.msra.mxu0 0.0
    %584 = vmatpush.msra.mxu0 0.0
    %585 = vmatpush.msra.mxu0 0.0
    %586 = vmatpush.msra.mxu0 0.0
    %587 = vmatpush.msra.mxu0 0.0
    %588 = vmatpush.msra.mxu0 0.0
    %589 = vmatpush.msra.mxu0 0.0
    %590 = vmatpush.msra.mxu0 0.0
    %591 = vmatpush.msra.mxu0 %v97
    %592 = vmatpush.msra.mxu0 %v96
    %593 = vmatpush.msra.mxu0 %v95
    %594 = vmatpush.msra.mxu0 %v94
    %595 = vmatmul.f32.gmra.mxu0 %v462
    %v596 = vpop.f32.mrf.mxu0
    %v597 = vadd.f32 0.0, %v596
    %598 = vdwg.mxu0
    %v600 = vrot.slane %v597, 6
    %601 = vrot.lane.b32.xlu0 %v600, 96
    %v602 = vpop.permute.xlu0 %601
    %v604 = vadd.f32 %v77, %v602
    %v605 = vxor.u32 %v604, 2147483648
    %v606 = vmul.f32 %v605, 1.442695
    %v607 = vpow.pop %v606
    %v608 = vadd.f32 %v607, 1.0
    %v609 = vrcp.pop %v608
    %v610 = vmul.f32 %v608, %v609
    %v611 = vsub.f32 1.0, %v610
    %v612 = vmul.f32 %v609, %v611
    %v613 = vadd.f32 %v609, %v612
    %vm614 = vweird.f32 %v608
    %vm615 = vweird.f32 %v609
    %vm616 = vmor %vm614, %vm615
    %v617 = vsel %vm616, %v609, %v613
    %v618 = vand.u32 2147483647, %v608
    %vm619 = vcmp.eq.f32.partialorder %v618, 8.507059e+37
    %v620 = vand.u32 %v608, 2147483648
    %v621 = vor.u32 1.1754944e-38, %v620
    %v622 = vsel %vm619, %v621, %v617
    %v623 = vmul.f32 1.0, %v622
    %v625 = vrot.slane %v451, 7
    %v627 = vmul.f32 %v551, %v625
    %629 = vrot.lane.b32.xlu0 %v578, 64
    %v630 = vpop.permute.xlu0 %629
    %v632 = vmul.f32 %v506, %v630
    %634 = vrot.lane.b32.xlu0 %v632, 32
    %v635 = vpop.permute.xlu0 %634
    %v637 = vadd.f32 %v627, %v635
    %v638 = vtanh.pop %v637
    %640 = vrot.lane.b32.xlu0 %v638, 64
    %v641 = vpop.permute.xlu0 %640
    %v643 = vmul.f32 %v623, %v641
    %v645 = vrot.slane %v643, 2
    %646 = vrot.lane.b32.xlu0 %v645, 32
    %v647 = vpop.permute.xlu0 %646
    %v648 = vsel %vm98, %v647, 0
    %650 = vmatpush.msra.mxu0 0.0
    %651 = vmatpush.msra.mxu0 0.0
    %652 = vmatpush.msra.mxu0 0.0
    %653 = vmatpush.msra.mxu0 0.0
    %654 = vmatpush.msra.mxu0 0.0
    %655 = vmatpush.msra.mxu0 0.0
    %656 = vmatpush.msra.mxu0 0.0
    %657 = vmatpush.msra.mxu0 0.0
    %658 = vmatpush.msra.mxu0 0.0
    %659 = vmatpush.msra.mxu0 0.0
    %660 = vmatpush.msra.mxu0 0.0
    %661 = vmatpush.msra.mxu0 0.0
    %662 = vmatpush.msra.mxu0 %v82
    %663 = vmatpush.msra.mxu0 %v81
    %664 = vmatpush.msra.mxu0 %v80
    %665 = vmatpush.msra.mxu0 %v79
    %666 = vmatmul.f32.gmra.mxu0 %v648
    %v667 = vpop.f32.mrf.mxu0
    %v668 = vadd.f32 0.0, %v667
    %669 = vdwg.mxu0
    %v671 = vrot.slane %v668, 5
    %v673 = vadd.f32 %v77, %v671
    %v674 = vxor.u32 %v673, 2147483648
    %v675 = vmul.f32 %v674, 1.442695
    %v676 = vpow.pop %v675
    %v677 = vadd.f32 %v676, 1.0
    %v678 = vrcp.pop %v677
    %v679 = vmul.f32 %v677, %v678
    %v680 = vsub.f32 1.0, %v679
    %v681 = vmul.f32 %v678, %v680
    %v682 = vadd.f32 %v678, %v681
    %vm683 = vweird.f32 %v677
    %vm684 = vweird.f32 %v678
    %vm685 = vmor %vm683, %vm684
    %v686 = vsel %vm685, %v678, %v682
    %v687 = vand.u32 2147483647, %v677
    %vm688 = vcmp.eq.f32.partialorder %v687, 8.507059e+37
    %v689 = vand.u32 %v677, 2147483648
    %v690 = vor.u32 1.1754944e-38, %v689
    %v691 = vsel %vm688, %v690, %v686
    %v692 = vmul.f32 1.0, %v691
    %693 = vmatpush.msra.mxu0 0.0
    %694 = vmatpush.msra.mxu0 0.0
    %695 = vmatpush.msra.mxu0 0.0
    %696 = vmatpush.msra.mxu0 0.0
    %697 = vmatpush.msra.mxu0 0.0
    %698 = vmatpush.msra.mxu0 0.0
    %699 = vmatpush.msra.mxu0 0.0
    %700 = vmatpush.msra.mxu0 0.0
    %701 = vmatpush.msra.mxu0 0.0
    %702 = vmatpush.msra.mxu0 0.0
    %703 = vmatpush.msra.mxu0 0.0
    %704 = vmatpush.msra.mxu0 0.0
    %705 = vmatpush.msra.mxu0 %v87
    %706 = vmatpush.msra.mxu0 %v86
    %707 = vmatpush.msra.mxu0 %v85
    %708 = vmatpush.msra.mxu0 %v84
    %709 = vmatmul.f32.gmra.mxu0 %v648
    %v710 = vpop.f32.mrf.mxu0
    %v711 = vadd.f32 0.0, %v710
    %712 = vdwg.mxu0
    %v714 = vrot.slane %v711, 5
    %715 = vrot.lane.b32.xlu0 %v714, 32
    %v716 = vpop.permute.xlu0 %715
    %v718 = vadd.f32 %v77, %v716
    %v719 = vxor.u32 %v718, 2147483648
    %v720 = vmul.f32 %v719, 1.442695
    %v721 = vpow.pop %v720
    %v722 = vadd.f32 %v721, 1.0
    %v723 = vrcp.pop %v722
    %v724 = vmul.f32 %v722, %v723
    %v725 = vsub.f32 1.0, %v724
    %v726 = vmul.f32 %v723, %v725
    %v727 = vadd.f32 %v723, %v726
    %vm728 = vweird.f32 %v722
    %vm729 = vweird.f32 %v723
    %vm730 = vmor %vm728, %vm729
    %v731 = vsel %vm730, %v723, %v727
    %v732 = vand.u32 2147483647, %v722
    %vm733 = vcmp.eq.f32.partialorder %v732, 8.507059e+37
    %v734 = vand.u32 %v722, 2147483648
    %v735 = vor.u32 1.1754944e-38, %v734
    %v736 = vsel %vm733, %v735, %v731
    %v737 = vmul.f32 1.0, %v736
    %738 = vmatpush.msra.mxu0 0.0
    %739 = vmatpush.msra.mxu0 0.0
    %740 = vmatpush.msra.mxu0 0.0
    %741 = vmatpush.msra.mxu0 0.0
    %742 = vmatpush.msra.mxu0 0.0
    %743 = vmatpush.msra.mxu0 0.0
    %744 = vmatpush.msra.mxu0 0.0
    %745 = vmatpush.msra.mxu0 0.0
    %746 = vmatpush.msra.mxu0 0.0
    %747 = vmatpush.msra.mxu0 0.0
    %748 = vmatpush.msra.mxu0 0.0
    %749 = vmatpush.msra.mxu0 0.0
    %750 = vmatpush.msra.mxu0 %v92
    %751 = vmatpush.msra.mxu0 %v91
    %752 = vmatpush.msra.mxu0 %v90
    %753 = vmatpush.msra.mxu0 %v89
    %754 = vmatmul.f32.gmra.mxu0 %v648
    %v755 = vpop.f32.mrf.mxu0
    %v756 = vadd.f32 0.0, %v755
    %757 = vdwg.mxu0
    %v759 = vrot.slane %v756, 5
    %760 = vrot.lane.b32.xlu0 %v759, 64
    %v761 = vpop.permute.xlu0 %760
    %v763 = vadd.f32 %v77, %v761
    %v764 = vtanh.pop %v763
    %765 = vmatpush.msra.mxu0 0.0
    %766 = vmatpush.msra.mxu0 0.0
    %767 = vmatpush.msra.mxu0 0.0
    %768 = vmatpush.msra.mxu0 0.0
    %769 = vmatpush.msra.mxu0 0.0
    %770 = vmatpush.msra.mxu0 0.0
    %771 = vmatpush.msra.mxu0 0.0
    %772 = vmatpush.msra.mxu0 0.0
    %773 = vmatpush.msra.mxu0 0.0
    %774 = vmatpush.msra.mxu0 0.0
    %775 = vmatpush.msra.mxu0 0.0
    %776 = vmatpush.msra.mxu0 0.0
    %777 = vmatpush.msra.mxu0 %v97
    %778 = vmatpush.msra.mxu0 %v96
    %779 = vmatpush.msra.mxu0 %v95
    %780 = vmatpush.msra.mxu0 %v94
    %781 = vmatmul.f32.gmra.mxu0 %v648
    %v782 = vpop.f32.mrf.mxu0
    %v783 = vadd.f32 0.0, %v782
    %784 = vdwg.mxu0
    %v786 = vrot.slane %v783, 5
    %787 = vrot.lane.b32.xlu0 %v786, 96
    %v788 = vpop.permute.xlu0 %787
    %v790 = vadd.f32 %v77, %v788
    %v791 = vxor.u32 %v790, 2147483648
    %v792 = vmul.f32 %v791, 1.442695
    %v793 = vpow.pop %v792
    %v794 = vadd.f32 %v793, 1.0
    %v795 = vrcp.pop %v794
    %v796 = vmul.f32 %v794, %v795
    %v797 = vsub.f32 1.0, %v796
    %v798 = vmul.f32 %v795, %v797
    %v799 = vadd.f32 %v795, %v798
    %vm800 = vweird.f32 %v794
    %vm801 = vweird.f32 %v795
    %vm802 = vmor %vm800, %vm801
    %v803 = vsel %vm802, %v795, %v799
    %v804 = vand.u32 2147483647, %v794
    %vm805 = vcmp.eq.f32.partialorder %v804, 8.507059e+37
    %v806 = vand.u32 %v794, 2147483648
    %v807 = vor.u32 1.1754944e-38, %v806
    %v808 = vsel %vm805, %v807, %v803
    %v809 = vmul.f32 1.0, %v808
    %v811 = vrot.slane %v637, 7
    %v813 = vmul.f32 %v737, %v811
    %815 = vrot.lane.b32.xlu0 %v764, 64
    %v816 = vpop.permute.xlu0 %815
    %v818 = vmul.f32 %v692, %v816
    %820 = vrot.lane.b32.xlu0 %v818, 32
    %v821 = vpop.permute.xlu0 %820
    %v823 = vadd.f32 %v813, %v821
    %v824 = vtanh.pop %v823
    %826 = vrot.lane.b32.xlu0 %v824, 64
    %v827 = vpop.permute.xlu0 %826
    %v829 = vmul.f32 %v809, %v827
    %v831 = vrot.slane %v829, 3
    %832 = vrot.lane.b32.xlu0 %v831, 32
    %v833 = vpop.permute.xlu0 %832
    %v834 = vsel %vm98, %v833, 0
    %836 = vmatpush.msra.mxu0 0.0
    %837 = vmatpush.msra.mxu0 0.0
    %838 = vmatpush.msra.mxu0 0.0
    %839 = vmatpush.msra.mxu0 0.0
    %840 = vmatpush.msra.mxu0 0.0
    %841 = vmatpush.msra.mxu0 0.0
    %842 = vmatpush.msra.mxu0 0.0
    %843 = vmatpush.msra.mxu0 0.0
    %844 = vmatpush.msra.mxu0 0.0
    %845 = vmatpush.msra.mxu0 0.0
    %846 = vmatpush.msra.mxu0 0.0
    %847 = vmatpush.msra.mxu0 0.0
    %848 = vmatpush.msra.mxu0 %v82
    %849 = vmatpush.msra.mxu0 %v81
    %850 = vmatpush.msra.mxu0 %v80
    %851 = vmatpush.msra.mxu0 %v79
    %852 = vmatmul.f32.gmra.mxu0 %v834
    %v853 = vpop.f32.mrf.mxu0
    %v854 = vadd.f32 0.0, %v853
    %855 = vdwg.mxu0
    %v857 = vrot.slane %v854, 4
    %v859 = vadd.f32 %v77, %v857
    %v860 = vxor.u32 %v859, 2147483648
    %v861 = vmul.f32 %v860, 1.442695
    %v862 = vpow.pop %v861
    %v863 = vadd.f32 %v862, 1.0
    %v864 = vrcp.pop %v863
    %v865 = vmul.f32 %v863, %v864
    %v866 = vsub.f32 1.0, %v865
    %v867 = vmul.f32 %v864, %v866
    %v868 = vadd.f32 %v864, %v867
    %vm869 = vweird.f32 %v863
    %vm870 = vweird.f32 %v864
    %vm871 = vmor %vm869, %vm870
    %v872 = vsel %vm871, %v864, %v868
    %v873 = vand.u32 2147483647, %v863
    %vm874 = vcmp.eq.f32.partialorder %v873, 8.507059e+37
    %v875 = vand.u32 %v863, 2147483648
    %v876 = vor.u32 1.1754944e-38, %v875
    %v877 = vsel %vm874, %v876, %v872
    %v878 = vmul.f32 1.0, %v877
    %879 = vmatpush.msra.mxu0 0.0
    %880 = vmatpush.msra.mxu0 0.0
    %881 = vmatpush.msra.mxu0 0.0
    %882 = vmatpush.msra.mxu0 0.0
    %883 = vmatpush.msra.mxu0 0.0
    %884 = vmatpush.msra.mxu0 0.0
    %885 = vmatpush.msra.mxu0 0.0
    %886 = vmatpush.msra.mxu0 0.0
    %887 = vmatpush.msra.mxu0 0.0
    %888 = vmatpush.msra.mxu0 0.0
    %889 = vmatpush.msra.mxu0 0.0
    %890 = vmatpush.msra.mxu0 0.0
    %891 = vmatpush.msra.mxu0 %v87
    %892 = vmatpush.msra.mxu0 %v86
    %893 = vmatpush.msra.mxu0 %v85
    %894 = vmatpush.msra.mxu0 %v84
    %895 = vmatmul.f32.gmra.mxu0 %v834
    %v896 = vpop.f32.mrf.mxu0
    %v897 = vadd.f32 0.0, %v896
    %898 = vdwg.mxu0
    %v900 = vrot.slane %v897, 4
    %901 = vrot.lane.b32.xlu0 %v900, 32
    %v902 = vpop.permute.xlu0 %901
    %v904 = vadd.f32 %v77, %v902
    %v905 = vxor.u32 %v904, 2147483648
    %v906 = vmul.f32 %v905, 1.442695
    %v907 = vpow.pop %v906
    %v908 = vadd.f32 %v907, 1.0
    %v909 = vrcp.pop %v908
    %v910 = vmul.f32 %v908, %v909
    %v911 = vsub.f32 1.0, %v910
    %v912 = vmul.f32 %v909, %v911
    %v913 = vadd.f32 %v909, %v912
    %vm914 = vweird.f32 %v908
    %vm915 = vweird.f32 %v909
    %vm916 = vmor %vm914, %vm915
    %v917 = vsel %vm916, %v909, %v913
    %v918 = vand.u32 2147483647, %v908
    %vm919 = vcmp.eq.f32.partialorder %v918, 8.507059e+37
    %v920 = vand.u32 %v908, 2147483648
    %v921 = vor.u32 1.1754944e-38, %v920
    %v922 = vsel %vm919, %v921, %v917
    %v923 = vmul.f32 1.0, %v922
    %924 = vmatpush.msra.mxu0 0.0
    %925 = vmatpush.msra.mxu0 0.0
    %926 = vmatpush.msra.mxu0 0.0
    %927 = vmatpush.msra.mxu0 0.0
    %928 = vmatpush.msra.mxu0 0.0
    %929 = vmatpush.msra.mxu0 0.0
    %930 = vmatpush.msra.mxu0 0.0
    %931 = vmatpush.msra.mxu0 0.0
    %932 = vmatpush.msra.mxu0 0.0
    %933 = vmatpush.msra.mxu0 0.0
    %934 = vmatpush.msra.mxu0 0.0
    %935 = vmatpush.msra.mxu0 0.0
    %936 = vmatpush.msra.mxu0 %v92
    %937 = vmatpush.msra.mxu0 %v91
    %938 = vmatpush.msra.mxu0 %v90
    %939 = vmatpush.msra.mxu0 %v89
    %940 = vmatmul.f32.gmra.mxu0 %v834
    %v941 = vpop.f32.mrf.mxu0
    %v942 = vadd.f32 0.0, %v941
    %943 = vdwg.mxu0
    %v945 = vrot.slane %v942, 4
    %946 = vrot.lane.b32.xlu0 %v945, 64
    %v947 = vpop.permute.xlu0 %946
    %v949 = vadd.f32 %v77, %v947
    %v950 = vtanh.pop %v949
    %951 = vmatpush.msra.mxu0 0.0
    %952 = vmatpush.msra.mxu0 0.0
    %953 = vmatpush.msra.mxu0 0.0
    %954 = vmatpush.msra.mxu0 0.0
    %955 = vmatpush.msra.mxu0 0.0
    %956 = vmatpush.msra.mxu0 0.0
    %957 = vmatpush.msra.mxu0 0.0
    %958 = vmatpush.msra.mxu0 0.0
    %959 = vmatpush.msra.mxu0 0.0
    %960 = vmatpush.msra.mxu0 0.0
    %961 = vmatpush.msra.mxu0 0.0
    %962 = vmatpush.msra.mxu0 0.0
    %963 = vmatpush.msra.mxu0 %v97
    %964 = vmatpush.msra.mxu0 %v96
    %965 = vmatpush.msra.mxu0 %v95
    %966 = vmatpush.msra.mxu0 %v94
    %967 = vmatmul.f32.gmra.mxu0 %v834
    %v968 = vpop.f32.mrf.mxu0
    %v969 = vadd.f32 0.0, %v968
    %970 = vdwg.mxu0
    %v972 = vrot.slane %v969, 4
    %973 = vrot.lane.b32.xlu0 %v972, 96
    %v974 = vpop.permute.xlu0 %973
    %v976 = vadd.f32 %v77, %v974
    %v977 = vxor.u32 %v976, 2147483648
    %v978 = vmul.f32 %v977, 1.442695
    %v979 = vpow.pop %v978
    %v980 = vadd.f32 %v979, 1.0
    %v981 = vrcp.pop %v980
    %v982 = vmul.f32 %v980, %v981
    %v983 = vsub.f32 1.0, %v982
    %v984 = vmul.f32 %v981, %v983
    %v985 = vadd.f32 %v981, %v984
    %vm986 = vweird.f32 %v980
    %vm987 = vweird.f32 %v981
    %vm988 = vmor %vm986, %vm987
    %v989 = vsel %vm988, %v981, %v985
    %v990 = vand.u32 2147483647, %v980
    %vm991 = vcmp.eq.f32.partialorder %v990, 8.507059e+37
    %v992 = vand.u32 %v980, 2147483648
    %v993 = vor.u32 1.1754944e-38, %v992
    %v994 = vsel %vm991, %v993, %v989
    %v995 = vmul.f32 1.0, %v994
    %v997 = vrot.slane %v823, 7
    %v999 = vmul.f32 %v923, %v997
    %1001 = vrot.lane.b32.xlu0 %v950, 64
    %v1002 = vpop.permute.xlu0 %1001
    %v1004 = vmul.f32 %v878, %v1002
    %1006 = vrot.lane.b32.xlu0 %v1004, 32
    %v1007 = vpop.permute.xlu0 %1006
    %v1009 = vadd.f32 %v999, %v1007
    %v1010 = vtanh.pop %v1009
    %1012 = vrot.lane.b32.xlu0 %v1010, 64
    %v1013 = vpop.permute.xlu0 %1012
    %v1015 = vmul.f32 %v995, %v1013
    %v1017 = vrot.slane %v1015, 4
    %1018 = vrot.lane.b32.xlu0 %v1017, 32
    %v1019 = vpop.permute.xlu0 %1018
    %v1020 = vsel %vm98, %v1019, 0
    %1022 = vmatpush.msra.mxu0 0.0
    %1023 = vmatpush.msra.mxu0 0.0
    %1024 = vmatpush.msra.mxu0 0.0
    %1025 = vmatpush.msra.mxu0 0.0
    %1026 = vmatpush.msra.mxu0 0.0
    %1027 = vmatpush.msra.mxu0 0.0
    %1028 = vmatpush.msra.mxu0 0.0
    %1029 = vmatpush.msra.mxu0 0.0
    %1030 = vmatpush.msra.mxu0 0.0
    %1031 = vmatpush.msra.mxu0 0.0
    %1032 = vmatpush.msra.mxu0 0.0
    %1033 = vmatpush.msra.mxu0 0.0
    %1034 = vmatpush.msra.mxu0 %v82
    %1035 = vmatpush.msra.mxu0 %v81
    %1036 = vmatpush.msra.mxu0 %v80
    %1037 = vmatpush.msra.mxu0 %v79
    %1038 = vmatmul.f32.gmra.mxu0 %v1020
    %v1039 = vpop.f32.mrf.mxu0
    %v1040 = vadd.f32 0.0, %v1039
    %1041 = vdwg.mxu0
    %v1043 = vrot.slane %v1040, 3
    %v1045 = vadd.f32 %v77, %v1043
    %v1046 = vxor.u32 %v1045, 2147483648
    %v1047 = vmul.f32 %v1046, 1.442695
    %v1048 = vpow.pop %v1047
    %v1049 = vadd.f32 %v1048, 1.0
    %v1050 = vrcp.pop %v1049
    %v1051 = vmul.f32 %v1049, %v1050
    %v1052 = vsub.f32 1.0, %v1051
    %v1053 = vmul.f32 %v1050, %v1052
    %v1054 = vadd.f32 %v1050, %v1053
    %vm1055 = vweird.f32 %v1049
    %vm1056 = vweird.f32 %v1050
    %vm1057 = vmor %vm1055, %vm1056
    %v1058 = vsel %vm1057, %v1050, %v1054
    %v1059 = vand.u32 2147483647, %v1049
    %vm1060 = vcmp.eq.f32.partialorder %v1059, 8.507059e+37
    %v1061 = vand.u32 %v1049, 2147483648
    %v1062 = vor.u32 1.1754944e-38, %v1061
    %v1063 = vsel %vm1060, %v1062, %v1058
    %v1064 = vmul.f32 1.0, %v1063
    %1065 = vmatpush.msra.mxu0 0.0
    %1066 = vmatpush.msra.mxu0 0.0
    %1067 = vmatpush.msra.mxu0 0.0
    %1068 = vmatpush.msra.mxu0 0.0
    %1069 = vmatpush.msra.mxu0 0.0
    %1070 = vmatpush.msra.mxu0 0.0
    %1071 = vmatpush.msra.mxu0 0.0
    %1072 = vmatpush.msra.mxu0 0.0
    %1073 = vmatpush.msra.mxu0 0.0
    %1074 = vmatpush.msra.mxu0 0.0
    %1075 = vmatpush.msra.mxu0 0.0
    %1076 = vmatpush.msra.mxu0 0.0
    %1077 = vmatpush.msra.mxu0 %v87
    %1078 = vmatpush.msra.mxu0 %v86
    %1079 = vmatpush.msra.mxu0 %v85
    %1080 = vmatpush.msra.mxu0 %v84
    %1081 = vmatmul.f32.gmra.mxu0 %v1020
    %v1082 = vpop.f32.mrf.mxu0
    %v1083 = vadd.f32 0.0, %v1082
    %1084 = vdwg.mxu0
    %v1086 = vrot.slane %v1083, 3
    %1087 = vrot.lane.b32.xlu0 %v1086, 32
    %v1088 = vpop.permute.xlu0 %1087
    %v1090 = vadd.f32 %v77, %v1088
    %v1091 = vxor.u32 %v1090, 2147483648
    %v1092 = vmul.f32 %v1091, 1.442695
    %v1093 = vpow.pop %v1092
    %v1094 = vadd.f32 %v1093, 1.0
    %v1095 = vrcp.pop %v1094
    %v1096 = vmul.f32 %v1094, %v1095
    %v1097 = vsub.f32 1.0, %v1096
    %v1098 = vmul.f32 %v1095, %v1097
    %v1099 = vadd.f32 %v1095, %v1098
    %vm1100 = vweird.f32 %v1094
    %vm1101 = vweird.f32 %v1095
    %vm1102 = vmor %vm1100, %vm1101
    %v1103 = vsel %vm1102, %v1095, %v1099
    %v1104 = vand.u32 2147483647, %v1094
    %vm1105 = vcmp.eq.f32.partialorder %v1104, 8.507059e+37
    %v1106 = vand.u32 %v1094, 2147483648
    %v1107 = vor.u32 1.1754944e-38, %v1106
    %v1108 = vsel %vm1105, %v1107, %v1103
    %v1109 = vmul.f32 1.0, %v1108
    %1110 = vmatpush.msra.mxu0 0.0
    %1111 = vmatpush.msra.mxu0 0.0
    %1112 = vmatpush.msra.mxu0 0.0
    %1113 = vmatpush.msra.mxu0 0.0
    %1114 = vmatpush.msra.mxu0 0.0
    %1115 = vmatpush.msra.mxu0 0.0
    %1116 = vmatpush.msra.mxu0 0.0
    %1117 = vmatpush.msra.mxu0 0.0
    %1118 = vmatpush.msra.mxu0 0.0
    %1119 = vmatpush.msra.mxu0 0.0
    %1120 = vmatpush.msra.mxu0 0.0
    %1121 = vmatpush.msra.mxu0 0.0
    %1122 = vmatpush.msra.mxu0 %v92
    %1123 = vmatpush.msra.mxu0 %v91
    %1124 = vmatpush.msra.mxu0 %v90
    %1125 = vmatpush.msra.mxu0 %v89
    %1126 = vmatmul.f32.gmra.mxu0 %v1020
    %v1127 = vpop.f32.mrf.mxu0
    %v1128 = vadd.f32 0.0, %v1127
    %1129 = vdwg.mxu0
    %v1131 = vrot.slane %v1128, 3
    %1132 = vrot.lane.b32.xlu0 %v1131, 64
    %v1133 = vpop.permute.xlu0 %1132
    %v1135 = vadd.f32 %v77, %v1133
    %v1136 = vtanh.pop %v1135
    %1137 = vmatpush.msra.mxu0 0.0
    %1138 = vmatpush.msra.mxu0 0.0
    %1139 = vmatpush.msra.mxu0 0.0
    %1140 = vmatpush.msra.mxu0 0.0
    %1141 = vmatpush.msra.mxu0 0.0
    %1142 = vmatpush.msra.mxu0 0.0
    %1143 = vmatpush.msra.mxu0 0.0
    %1144 = vmatpush.msra.mxu0 0.0
    %1145 = vmatpush.msra.mxu0 0.0
    %1146 = vmatpush.msra.mxu0 0.0
    %1147 = vmatpush.msra.mxu0 0.0
    %1148 = vmatpush.msra.mxu0 0.0
    %1149 = vmatpush.msra.mxu0 %v97
    %1150 = vmatpush.msra.mxu0 %v96
    %1151 = vmatpush.msra.mxu0 %v95
    %1152 = vmatpush.msra.mxu0 %v94
    %1153 = vmatmul.f32.gmra.mxu0 %v1020
    %v1154 = vpop.f32.mrf.mxu0
    %v1155 = vadd.f32 0.0, %v1154
    %1156 = vdwg.mxu0
    %v1158 = vrot.slane %v1155, 3
    %1159 = vrot.lane.b32.xlu0 %v1158, 96
    %v1160 = vpop.permute.xlu0 %1159
    %v1162 = vadd.f32 %v77, %v1160
    %v1163 = vxor.u32 %v1162, 2147483648
    %v1164 = vmul.f32 %v1163, 1.442695
    %v1165 = vpow.pop %v1164
    %v1166 = vadd.f32 %v1165, 1.0
    %v1167 = vrcp.pop %v1166
    %v1168 = vmul.f32 %v1166, %v1167
    %v1169 = vsub.f32 1.0, %v1168
    %v1170 = vmul.f32 %v1167, %v1169
    %v1171 = vadd.f32 %v1167, %v1170
    %vm1172 = vweird.f32 %v1166
    %vm1173 = vweird.f32 %v1167
    %vm1174 = vmor %vm1172, %vm1173
    %v1175 = vsel %vm1174, %v1167, %v1171
    %v1176 = vand.u32 2147483647, %v1166
    %vm1177 = vcmp.eq.f32.partialorder %v1176, 8.507059e+37
    %v1178 = vand.u32 %v1166, 2147483648
    %v1179 = vor.u32 1.1754944e-38, %v1178
    %v1180 = vsel %vm1177, %v1179, %v1175
    %v1181 = vmul.f32 1.0, %v1180
    %v1183 = vrot.slane %v1009, 7
    %v1185 = vmul.f32 %v1109, %v1183
    %1187 = vrot.lane.b32.xlu0 %v1136, 64
    %v1188 = vpop.permute.xlu0 %1187
    %v1190 = vmul.f32 %v1064, %v1188
    %1192 = vrot.lane.b32.xlu0 %v1190, 32
    %v1193 = vpop.permute.xlu0 %1192
    %v1195 = vadd.f32 %v1185, %v1193
    %v1196 = vtanh.pop %v1195
    %1198 = vrot.lane.b32.xlu0 %v1196, 64
    %v1199 = vpop.permute.xlu0 %1198
    %v1201 = vmul.f32 %v1181, %v1199
    %v1203 = vrot.slane %v1201, 5
    %1204 = vrot.lane.b32.xlu0 %v1203, 32
    %v1205 = vpop.permute.xlu0 %1204
    %v1206 = vsel %vm98, %v1205, 0
    %1208 = vmatpush.msra.mxu0 0.0
    %1209 = vmatpush.msra.mxu0 0.0
    %1210 = vmatpush.msra.mxu0 0.0
    %1211 = vmatpush.msra.mxu0 0.0
    %1212 = vmatpush.msra.mxu0 0.0
    %1213 = vmatpush.msra.mxu0 0.0
    %1214 = vmatpush.msra.mxu0 0.0
    %1215 = vmatpush.msra.mxu0 0.0
    %1216 = vmatpush.msra.mxu0 0.0
    %1217 = vmatpush.msra.mxu0 0.0
    %1218 = vmatpush.msra.mxu0 0.0
    %1219 = vmatpush.msra.mxu0 0.0
    %1220 = vmatpush.msra.mxu0 %v82
    %1221 = vmatpush.msra.mxu0 %v81
    %1222 = vmatpush.msra.mxu0 %v80
    %1223 = vmatpush.msra.mxu0 %v79
    %1224 = vmatmul.f32.gmra.mxu0 %v1206
    %v1225 = vpop.f32.mrf.mxu0
    %v1226 = vadd.f32 0.0, %v1225
    %1227 = vdwg.mxu0
    %v1229 = vrot.slane %v1226, 2
    %v1231 = vadd.f32 %v77, %v1229
    %v1232 = vxor.u32 %v1231, 2147483648
    %v1233 = vmul.f32 %v1232, 1.442695
    %v1234 = vpow.pop %v1233
    %v1235 = vadd.f32 %v1234, 1.0
    %v1236 = vrcp.pop %v1235
    %v1237 = vmul.f32 %v1235, %v1236
    %v1238 = vsub.f32 1.0, %v1237
    %v1239 = vmul.f32 %v1236, %v1238
    %v1240 = vadd.f32 %v1236, %v1239
    %vm1241 = vweird.f32 %v1235
    %vm1242 = vweird.f32 %v1236
    %vm1243 = vmor %vm1241, %vm1242
    %v1244 = vsel %vm1243, %v1236, %v1240
    %v1245 = vand.u32 2147483647, %v1235
    %vm1246 = vcmp.eq.f32.partialorder %v1245, 8.507059e+37
    %v1247 = vand.u32 %v1235, 2147483648
    %v1248 = vor.u32 1.1754944e-38, %v1247
    %v1249 = vsel %vm1246, %v1248, %v1244
    %v1250 = vmul.f32 1.0, %v1249
    %1251 = vmatpush.msra.mxu0 0.0
    %1252 = vmatpush.msra.mxu0 0.0
    %1253 = vmatpush.msra.mxu0 0.0
    %1254 = vmatpush.msra.mxu0 0.0
    %1255 = vmatpush.msra.mxu0 0.0
    %1256 = vmatpush.msra.mxu0 0.0
    %1257 = vmatpush.msra.mxu0 0.0
    %1258 = vmatpush.msra.mxu0 0.0
    %1259 = vmatpush.msra.mxu0 0.0
    %1260 = vmatpush.msra.mxu0 0.0
    %1261 = vmatpush.msra.mxu0 0.0
    %1262 = vmatpush.msra.mxu0 0.0
    %1263 = vmatpush.msra.mxu0 %v87
    %1264 = vmatpush.msra.mxu0 %v86
    %1265 = vmatpush.msra.mxu0 %v85
    %1266 = vmatpush.msra.mxu0 %v84
    %1267 = vmatmul.f32.gmra.mxu0 %v1206
    %v1268 = vpop.f32.mrf.mxu0
    %v1269 = vadd.f32 0.0, %v1268
    %1270 = vdwg.mxu0
    %v1272 = vrot.slane %v1269, 2
    %1273 = vrot.lane.b32.xlu0 %v1272, 32
    %v1274 = vpop.permute.xlu0 %1273
    %v1276 = vadd.f32 %v77, %v1274
    %v1277 = vxor.u32 %v1276, 2147483648
    %v1278 = vmul.f32 %v1277, 1.442695
    %v1279 = vpow.pop %v1278
    %v1280 = vadd.f32 %v1279, 1.0
    %v1281 = vrcp.pop %v1280
    %v1282 = vmul.f32 %v1280, %v1281
    %v1283 = vsub.f32 1.0, %v1282
    %v1284 = vmul.f32 %v1281, %v1283
    %v1285 = vadd.f32 %v1281, %v1284
    %vm1286 = vweird.f32 %v1280
    %vm1287 = vweird.f32 %v1281
    %vm1288 = vmor %vm1286, %vm1287
    %v1289 = vsel %vm1288, %v1281, %v1285
    %v1290 = vand.u32 2147483647, %v1280
    %vm1291 = vcmp.eq.f32.partialorder %v1290, 8.507059e+37
    %v1292 = vand.u32 %v1280, 2147483648
    %v1293 = vor.u32 1.1754944e-38, %v1292
    %v1294 = vsel %vm1291, %v1293, %v1289
    %v1295 = vmul.f32 1.0, %v1294
    %1296 = vmatpush.msra.mxu0 0.0
    %1297 = vmatpush.msra.mxu0 0.0
    %1298 = vmatpush.msra.mxu0 0.0
    %1299 = vmatpush.msra.mxu0 0.0
    %1300 = vmatpush.msra.mxu0 0.0
    %1301 = vmatpush.msra.mxu0 0.0
    %1302 = vmatpush.msra.mxu0 0.0
    %1303 = vmatpush.msra.mxu0 0.0
    %1304 = vmatpush.msra.mxu0 0.0
    %1305 = vmatpush.msra.mxu0 0.0
    %1306 = vmatpush.msra.mxu0 0.0
    %1307 = vmatpush.msra.mxu0 0.0
    %1308 = vmatpush.msra.mxu0 %v92
    %1309 = vmatpush.msra.mxu0 %v91
    %1310 = vmatpush.msra.mxu0 %v90
    %1311 = vmatpush.msra.mxu0 %v89
    %1312 = vmatmul.f32.gmra.mxu0 %v1206
    %v1313 = vpop.f32.mrf.mxu0
    %v1314 = vadd.f32 0.0, %v1313
    %1315 = vdwg.mxu0
    %v1317 = vrot.slane %v1314, 2
    %1318 = vrot.lane.b32.xlu0 %v1317, 64
    %v1319 = vpop.permute.xlu0 %1318
    %v1321 = vadd.f32 %v77, %v1319
    %v1322 = vtanh.pop %v1321
    %1323 = vmatpush.msra.mxu0 0.0
    %1324 = vmatpush.msra.mxu0 0.0
    %1325 = vmatpush.msra.mxu0 0.0
    %1326 = vmatpush.msra.mxu0 0.0
    %1327 = vmatpush.msra.mxu0 0.0
    %1328 = vmatpush.msra.mxu0 0.0
    %1329 = vmatpush.msra.mxu0 0.0
    %1330 = vmatpush.msra.mxu0 0.0
    %1331 = vmatpush.msra.mxu0 0.0
    %1332 = vmatpush.msra.mxu0 0.0
    %1333 = vmatpush.msra.mxu0 0.0
    %1334 = vmatpush.msra.mxu0 0.0
    %1335 = vmatpush.msra.mxu0 %v97
    %1336 = vmatpush.msra.mxu0 %v96
    %1337 = vmatpush.msra.mxu0 %v95
    %1338 = vmatpush.msra.mxu0 %v94
    %1339 = vmatmul.f32.gmra.mxu0 %v1206
    %v1340 = vpop.f32.mrf.mxu0
    %v1341 = vadd.f32 0.0, %v1340
    %1342 = vdwg.mxu0
    %v1344 = vrot.slane %v1341, 2
    %1345 = vrot.lane.b32.xlu0 %v1344, 96
    %v1346 = vpop.permute.xlu0 %1345
    %v1348 = vadd.f32 %v77, %v1346
    %v1349 = vxor.u32 %v1348, 2147483648
    %v1350 = vmul.f32 %v1349, 1.442695
    %v1351 = vpow.pop %v1350
    %v1352 = vadd.f32 %v1351, 1.0
    %v1353 = vrcp.pop %v1352
    %v1354 = vmul.f32 %v1352, %v1353
    %v1355 = vsub.f32 1.0, %v1354
    %v1356 = vmul.f32 %v1353, %v1355
    %v1357 = vadd.f32 %v1353, %v1356
    %vm1358 = vweird.f32 %v1352
    %vm1359 = vweird.f32 %v1353
    %vm1360 = vmor %vm1358, %vm1359
    %v1361 = vsel %vm1360, %v1353, %v1357
    %v1362 = vand.u32 2147483647, %v1352
    %vm1363 = vcmp.eq.f32.partialorder %v1362, 8.507059e+37
    %v1364 = vand.u32 %v1352, 2147483648
    %v1365 = vor.u32 1.1754944e-38, %v1364
    %v1366 = vsel %vm1363, %v1365, %v1361
    %v1367 = vmul.f32 1.0, %v1366
    %v1369 = vrot.slane %v1195, 7
    %v1371 = vmul.f32 %v1295, %v1369
    %1373 = vrot.lane.b32.xlu0 %v1322, 64
    %v1374 = vpop.permute.xlu0 %1373
    %v1376 = vmul.f32 %v1250, %v1374
    %1378 = vrot.lane.b32.xlu0 %v1376, 32
    %v1379 = vpop.permute.xlu0 %1378
    %v1381 = vadd.f32 %v1371, %v1379
    %v1382 = vtanh.pop %v1381
    %1384 = vrot.lane.b32.xlu0 %v1382, 64
    %v1385 = vpop.permute.xlu0 %1384
    %v1387 = vmul.f32 %v1367, %v1385
    %v1389 = vrot.slane %v1387, 6
    %1390 = vrot.lane.b32.xlu0 %v1389, 32
    %v1391 = vpop.permute.xlu0 %1390
    %v1392 = vsel %vm98, %v1391, 0
    %1394 = vmatpush.msra.mxu0 0.0
    %1395 = vmatpush.msra.mxu0 0.0
    %1396 = vmatpush.msra.mxu0 0.0
    %1397 = vmatpush.msra.mxu0 0.0
    %1398 = vmatpush.msra.mxu0 0.0
    %1399 = vmatpush.msra.mxu0 0.0
    %1400 = vmatpush.msra.mxu0 0.0
    %1401 = vmatpush.msra.mxu0 0.0
    %1402 = vmatpush.msra.mxu0 0.0
    %1403 = vmatpush.msra.mxu0 0.0
    %1404 = vmatpush.msra.mxu0 0.0
    %1405 = vmatpush.msra.mxu0 0.0
    %1406 = vmatpush.msra.mxu0 %v82
    %1407 = vmatpush.msra.mxu0 %v81
    %1408 = vmatpush.msra.mxu0 %v80
    %1409 = vmatpush.msra.mxu0 %v79
    %1410 = vmatmul.f32.gmra.mxu0 %v1392
    %v1411 = vpop.f32.mrf.mxu0
    %v1412 = vadd.f32 0.0, %v1411
    %1413 = vdwg.mxu0
    %v1415 = vrot.slane %v1412, 1
    %v1417 = vadd.f32 %v77, %v1415
    %v1418 = vxor.u32 %v1417, 2147483648
    %v1419 = vmul.f32 %v1418, 1.442695
    %v1420 = vpow.pop %v1419
    %v1421 = vadd.f32 %v1420, 1.0
    %v1422 = vrcp.pop %v1421
    %v1423 = vmul.f32 %v1421, %v1422
    %v1424 = vsub.f32 1.0, %v1423
    %v1425 = vmul.f32 %v1422, %v1424
    %v1426 = vadd.f32 %v1422, %v1425
    %vm1427 = vweird.f32 %v1421
    %vm1428 = vweird.f32 %v1422
    %vm1429 = vmor %vm1427, %vm1428
    %v1430 = vsel %vm1429, %v1422, %v1426
    %v1431 = vand.u32 2147483647, %v1421
    %vm1432 = vcmp.eq.f32.partialorder %v1431, 8.507059e+37
    %v1433 = vand.u32 %v1421, 2147483648
    %v1434 = vor.u32 1.1754944e-38, %v1433
    %v1435 = vsel %vm1432, %v1434, %v1430
    %v1436 = vmul.f32 1.0, %v1435
    %1437 = vmatpush.msra.mxu0 0.0
    %1438 = vmatpush.msra.mxu0 0.0
    %1439 = vmatpush.msra.mxu0 0.0
    %1440 = vmatpush.msra.mxu0 0.0
    %1441 = vmatpush.msra.mxu0 0.0
    %1442 = vmatpush.msra.mxu0 0.0
    %1443 = vmatpush.msra.mxu0 0.0
    %1444 = vmatpush.msra.mxu0 0.0
    %1445 = vmatpush.msra.mxu0 0.0
    %1446 = vmatpush.msra.mxu0 0.0
    %1447 = vmatpush.msra.mxu0 0.0
    %1448 = vmatpush.msra.mxu0 0.0
    %1449 = vmatpush.msra.mxu0 %v87
    %1450 = vmatpush.msra.mxu0 %v86
    %1451 = vmatpush.msra.mxu0 %v85
    %1452 = vmatpush.msra.mxu0 %v84
    %1453 = vmatmul.f32.gmra.mxu0 %v1392
    %v1454 = vpop.f32.mrf.mxu0
    %v1455 = vadd.f32 0.0, %v1454
    %1456 = vdwg.mxu0
    %v1458 = vrot.slane %v1455, 1
    %1459 = vrot.lane.b32.xlu0 %v1458, 32
    %v1460 = vpop.permute.xlu0 %1459
    %v1462 = vadd.f32 %v77, %v1460
    %v1463 = vxor.u32 %v1462, 2147483648
    %v1464 = vmul.f32 %v1463, 1.442695
    %v1465 = vpow.pop %v1464
    %v1466 = vadd.f32 %v1465, 1.0
    %v1467 = vrcp.pop %v1466
    %v1468 = vmul.f32 %v1466, %v1467
    %v1469 = vsub.f32 1.0, %v1468
    %v1470 = vmul.f32 %v1467, %v1469
    %v1471 = vadd.f32 %v1467, %v1470
    %vm1472 = vweird.f32 %v1466
    %vm1473 = vweird.f32 %v1467
    %vm1474 = vmor %vm1472, %vm1473
    %v1475 = vsel %vm1474, %v1467, %v1471
    %v1476 = vand.u32 2147483647, %v1466
    %vm1477 = vcmp.eq.f32.partialorder %v1476, 8.507059e+37
    %v1478 = vand.u32 %v1466, 2147483648
    %v1479 = vor.u32 1.1754944e-38, %v1478
    %v1480 = vsel %vm1477, %v1479, %v1475
    %v1481 = vmul.f32 1.0, %v1480
    %1482 = vmatpush.msra.mxu0 0.0
    %1483 = vmatpush.msra.mxu0 0.0
    %1484 = vmatpush.msra.mxu0 0.0
    %1485 = vmatpush.msra.mxu0 0.0
    %1486 = vmatpush.msra.mxu0 0.0
    %1487 = vmatpush.msra.mxu0 0.0
    %1488 = vmatpush.msra.mxu0 0.0
    %1489 = vmatpush.msra.mxu0 0.0
    %1490 = vmatpush.msra.mxu0 0.0
    %1491 = vmatpush.msra.mxu0 0.0
    %1492 = vmatpush.msra.mxu0 0.0
    %1493 = vmatpush.msra.mxu0 0.0
    %1494 = vmatpush.msra.mxu0 %v92
    %1495 = vmatpush.msra.mxu0 %v91
    %1496 = vmatpush.msra.mxu0 %v90
    %1497 = vmatpush.msra.mxu0 %v89
    %1498 = vmatmul.f32.gmra.mxu0 %v1392
    %v1499 = vpop.f32.mrf.mxu0
    %v1500 = vadd.f32 0.0, %v1499
    %1501 = vdwg.mxu0
    %v1503 = vrot.slane %v1500, 1
    %1504 = vrot.lane.b32.xlu0 %v1503, 64
    %v1505 = vpop.permute.xlu0 %1504
    %v1507 = vadd.f32 %v77, %v1505
    %v1508 = vtanh.pop %v1507
    %1509 = vmatpush.msra.mxu0 0.0
    %1510 = vmatpush.msra.mxu0 0.0
    %1511 = vmatpush.msra.mxu0 0.0
    %1512 = vmatpush.msra.mxu0 0.0
    %1513 = vmatpush.msra.mxu0 0.0
    %1514 = vmatpush.msra.mxu0 0.0
    %1515 = vmatpush.msra.mxu0 0.0
    %1516 = vmatpush.msra.mxu0 0.0
    %1517 = vmatpush.msra.mxu0 0.0
    %1518 = vmatpush.msra.mxu0 0.0
    %1519 = vmatpush.msra.mxu0 0.0
    %1520 = vmatpush.msra.mxu0 0.0
    %1521 = vmatpush.msra.mxu0 %v97
    %1522 = vmatpush.msra.mxu0 %v96
    %1523 = vmatpush.msra.mxu0 %v95
    %1524 = vmatpush.msra.mxu0 %v94
    %1525 = vmatmul.f32.gmra.mxu0 %v1392
    %v1526 = vpop.f32.mrf.mxu0
    %v1527 = vadd.f32 0.0, %v1526
    %1528 = vdwg.mxu0
    %v1530 = vrot.slane %v1527, 1
    %1531 = vrot.lane.b32.xlu0 %v1530, 96
    %v1532 = vpop.permute.xlu0 %1531
    %v1534 = vadd.f32 %v77, %v1532
    %v1535 = vxor.u32 %v1534, 2147483648
    %v1536 = vmul.f32 %v1535, 1.442695
    %v1537 = vpow.pop %v1536
    %v1538 = vadd.f32 %v1537, 1.0
    %v1539 = vrcp.pop %v1538
    %v1540 = vmul.f32 %v1538, %v1539
    %v1541 = vsub.f32 1.0, %v1540
    %v1542 = vmul.f32 %v1539, %v1541
    %v1543 = vadd.f32 %v1539, %v1542
    %vm1544 = vweird.f32 %v1538
    %vm1545 = vweird.f32 %v1539
    %vm1546 = vmor %vm1544, %vm1545
    %v1547 = vsel %vm1546, %v1539, %v1543
    %v1548 = vand.u32 2147483647, %v1538
    %vm1549 = vcmp.eq.f32.partialorder %v1548, 8.507059e+37
    %v1550 = vand.u32 %v1538, 2147483648
    %v1551 = vor.u32 1.1754944e-38, %v1550
    %v1552 = vsel %vm1549, %v1551, %v1547
    %v1553 = vmul.f32 1.0, %v1552
    %v1555 = vrot.slane %v1381, 7
    %v1557 = vmul.f32 %v1481, %v1555
    %1559 = vrot.lane.b32.xlu0 %v1508, 64
    %v1560 = vpop.permute.xlu0 %1559
    %v1562 = vmul.f32 %v1436, %v1560
    %1564 = vrot.lane.b32.xlu0 %v1562, 32
    %v1565 = vpop.permute.xlu0 %1564
    %v1567 = vadd.f32 %v1557, %v1565
    %v1568 = vtanh.pop %v1567
    %1570 = vrot.lane.b32.xlu0 %v1568, 64
    %v1571 = vpop.permute.xlu0 %1570
    %v1573 = vmul.f32 %v1553, %v1571
    %vm1574 = vcmask 1040384
    %v1575 = vsel %vm1574, %v272, %v457
    %vm1576 = vcmask 1041408
    %v1577 = vsel %vm1576, %v1575, %v643
    %vm1578 = vcmask 1042432
    %v1579 = vsel %vm1578, %v1577, %v829
    %vm1580 = vcmask 1043456
    %v1581 = vsel %vm1580, %v1579, %v1015
    %vm1582 = vcmask 1044480
    %v1583 = vsel %vm1582, %v1581, %v1201
    %vm1584 = vcmask 1045504
    %v1585 = vsel %vm1584, %v1583, %v1387
    %vm1586 = vcmask 1046528
    %v1587 = vsel %vm1586, %v1585, %v1573
    %v1588 = vld [vmem:[%s4] sm:$0xff]
    %v1589 = vld [vmem:[%s4 + $0x8] sm:$0xff]
    %v1590 = vld [vmem:[%s4 + $0x10] sm:$0xff]
    %v1591 = vld [vmem:[%s4 + $0x18] sm:$0xff]
    %v1592 = vld [vmem:[%s5] sm:$0x1]
    %v1594 = vperm.slane %v1592, 0
    %1597 = vrot.lane.b32.xlu0 %v1587, 32
    %v1598 = vpop.permute.xlu0 %1597
    %v1599 = vsel %vm98, %v1598, 0
    %1601 = vmatpush.msra.mxu0 0.0
    %1602 = vmatpush.msra.mxu0 0.0
    %1603 = vmatpush.msra.mxu0 0.0
    %1604 = vmatpush.msra.mxu0 0.0
    %1605 = vmatpush.msra.mxu0 0.0
    %1606 = vmatpush.msra.mxu0 0.0
    %1607 = vmatpush.msra.mxu0 0.0
    %1608 = vmatpush.msra.mxu0 0.0
    %1609 = vmatpush.msra.mxu0 0.0
    %1610 = vmatpush.msra.mxu0 0.0
    %1611 = vmatpush.msra.mxu0 0.0
    %1612 = vmatpush.msra.mxu0 0.0
    %1613 = vmatpush.msra.mxu0 %v1591
    %1614 = vmatpush.msra.mxu0 %v1590
    %1615 = vmatpush.msra.mxu0 %v1589
    %1616 = vmatpush.msra.mxu0 %v1588
    %1617 = vmatmul.f32.gmra.mxu0 %v1599
    %v1618 = vpop.f32.mrf.mxu0
    %v1619 = vadd.f32 %v1594, %v1618
    %1620 = vdwg.mxu0
    %vm1621 = vcmask 64512
    %v1622 = vsel %vm1621, %v1619, -inf
    %1623 = vmax.xlane.f32.xlu0 %v1622
    %v1624 = vpop.xlane.xlu0 %1623
    %v1625 = vsub.f32 %v1619, %v1624
    %v1626 = vmul.f32 %v1625, 1.442695
    %v1627 = vpow.pop %v1626
    %v1628 = vsel %vm1621, %v1627, 0.0
    %1629 = vadd.xlane.f32.xlu0 %v1628
    %v1630 = vpop.xlane.xlu0 %1629
    %v1631 = vlog2.pop %v1630
    %v1632 = vmul.f32 %v1631, 0.6931472
    %v1633 = vadd.f32 %v1624, %v1632
    %v1634 = vsub.f32 %v1619, %v1633
    %1635 = vst.msk [vmem:[#allocation5] sm:$0xff] %vm1621, %v1634
    // Predicated region
    $region30: #{lstm_tagger_forward.1} parent=1 // pred_check
      _
    $region31: #{lstm_tagger_forward.1} parent=1 // pred_check_branch
      %1637 = sbr.rel (0) target = $region33
    $region32: #{lstm_tagger_forward.1} parent=1 // pred_region
      %1639 = vsyncadd [#allocation4], 0
      %s1641 = sshll.u32 [#allocation5], 4
      %s1642 = int_to_ptr.vmem [resolvable:$true] %s1641
      %s1643 = sshll.u32 %s6, 4
      %s1644 = int_to_ptr.hbm [resolvable:$true] %s1643
      %1646 = dma.vmem_to_hbm [thread:$0]  %s1642, 128, %s1644, [#allocation4]
    $region33: #{lstm_tagger_forward.1} parent=1 // pred_fallthru
      _
    // Predicated region
    $region34: #{lstm_tagger_forward.1} parent=1 // pred_check
      _
    $region35: #{lstm_tagger_forward.1} parent=1 // pred_check_branch
      %1648 = sbr.rel (0) target = $region37
    $region36: #{lstm_tagger_forward.1} parent=1 // pred_region
      %1650 = dma.done [#allocation4], 128
    $region37: #{lstm_tagger_forward.1} parent=1 // pred_fallthru
      _
    %1651 = vsyncpa [#allocation3], 1
    %1652 = vsyncpa [#allocation4], 1

</llo_original>
